<compile_context>
chip_gen: v7x
topology: tpu7x:2x2x1
jax: 0.10.0
libtpu: 0.0.40
codegen_flags: <defaults>
</compile_context>

<pallas_src>
import math
import jax
import jax.numpy as jnp
from jax.experimental import pallas as pl
from jax.experimental.pallas import tpu as pltpu

# ---------------- configuration (small, consistent with the module) ----------
INPUT_DIM  = 16
OUTPUT_DIM = 8
D_MODEL    = 32
N_HEADS    = 4
D_K        = D_MODEL // N_HEADS
NUM_LAYERS = 2
D_FF       = 64
LN_EPS     = 1e-5
PARAMS_PER_LAYER = 16

LANES   = 128                       # lane width; activations live in a [*, 128] slab
FF_OFF  = LANES - D_FF              # lane/row offset of the FF region inside a shared tile
W_BLOCKS = NUM_LAYERS + 1           # one shared tile per layer + one head tile
W_ROWS   = W_BLOCKS * LANES
N_BIAS_ROWS = 1 + 7 * NUM_LAYERS + 2

# packing feasibility (disjoint row/col regions inside each shared 128x128 tile)
assert D_MODEL + D_FF <= LANES
assert FF_OFF >= max(D_MODEL, INPUT_DIM, OUTPUT_DIM)
assert FF_OFF + D_FF == LANES


# ---------------------------------------------------------------------------
# Kernel
# ---------------------------------------------------------------------------
def transformer2_kernel(x_ref, w_ref, b_ref, out_ref):
    """One batch tile of the whole forward pass.

    x_ref:  [TILE_B, 128] f32, lanes >= INPUT_DIM are exactly zero.
    w_ref:  [(NUM_LAYERS+1)*128, 128] bf16 shared weight tiles
            (block 0 = head tile {Wi, W1o, W2o}, block 1+l = layer-l tile {W_attn, Wf1, Wf2}).
    b_ref:  [24, 128] f32 bias / LayerNorm rows (lane offsets match the tile packing).
    """

    def wblk(i):                                   # static [128,128] bf16 tile view
        return w_ref[i * LANES:(i + 1) * LANES, :]

    def brow(i):                                   # static [1,128] f32 bias/LN row
        return b_ref[i:i + 1, :]

    # lane masks, hoisted once ([1,128] -> replicated-sublane layout, broadcast is free)
    lane = jax.lax.broadcasted_iota(jnp.int32, (1, LANES), 1)
    keep_model = (lane < D_MODEL).astype(jnp.float32)   # keep lanes [0, D_MODEL)
    keep_ff    = (lane >= FF_OFF).astype(jnp.float32)   # keep lanes [FF_OFF, 128)

    def mm(lhs, tile):
        # bf16 x bf16 MXU matmul with f32 accumulation; full K=128 every time.
        return jnp.dot(lhs.astype(jnp.bfloat16), tile,
                       preferred_element_type=jnp.float32)

    def ln(x, gamma, beta):
        # Two-pass LayerNorm over the first D_MODEL lanes of a [*,128] slab.
        # Padded lanes of x are exactly zero; gamma/beta padding is zero, so the
        # output keeps padded lanes at exactly zero (the invariant all dots rely on).
        inv_n = 1.0 / D_MODEL
        mean = jnp.sum(x, axis=-1, keepdims=True) * inv_n
        c = (x - mean) * keep_model                      # mask: padded lanes -> 0
        var = jnp.sum(c * c, axis=-1, keepdims=True) * inv_n
        return c * jax.lax.rsqrt(var + LN_EPS) * gamma + beta

    head = wblk(0)                                  # {Wi, W1o, W2o}
    x = x_ref[...]                                  # [TILE_B, 128]

    # input projection (+ fused positional-encoding bias).  The head tile also holds
    # W1o in the FF lanes -> mask the junk FF lanes back to zero.
    h = (mm(x, head) + brow(0)) * keep_model

    for l in range(NUM_LAYERS):
        tile = wblk(1 + l)                          # {W_attn | Wf1 | Wf2} shared tile
        bb = 1 + 7 * l

        # --- self-attention sublayer (seq_len==1 -> softmax==1 -> ctx==V, fused) ---
        attn = (mm(h, tile) + brow(bb + 0)) * keep_model          # kill co-packed Wf1 lanes
        h = ln(h + attn, brow(bb + 3), brow(bb + 4))              # residual + norm1

        # --- feed-forward sublayer (output lands in lanes [FF_OFF,128)) ---
        ff = jnp.maximum(mm(h, tile) + brow(bb + 1), 0.0) * keep_ff
        ff = mm(ff, tile) + brow(bb + 2)                          # clean: back in lanes [0,D_MODEL)
        h = ln(h + ff, brow(bb + 5), brow(bb + 6))                # residual + norm2

    # --- output head: Linear -> ReLU -> Linear (lane-dense [TILE_B,128] store) ---
    bb = 1 + 7 * NUM_LAYERS
    o = jnp.maximum(mm(h, head) + brow(bb), 0.0) * keep_ff        # W1o lives in FF lanes
    o = mm(o, head) + brow(bb + 1)                                # W2o -> lanes [0, OUTPUT_DIM)
    out_ref[...] = o.astype(out_ref.dtype)


# ---------------------------------------------------------------------------
# Parameter construction / packing
# ---------------------------------------------------------------------------
def make_params(key):
    """Deterministic parameter init. Weights stored as [in, out], biases as [1, out]."""
    def lin(key, fan_in, fan_out):
        kw, kb = jax.random.split(key)
        w = jax.random.normal(kw, (fan_in, fan_out), jnp.float32) * 0.05
        b = jax.random.normal(kb, (1, fan_out), jnp.float32) * 0.05
        return w, b

    keys = jax.random.split(key, 3 + NUM_LAYERS)
    params = []

    wi, bi = lin(keys[0], INPUT_DIM, D_MODEL)
    params += [wi, bi]

    for l in range(NUM_LAYERS):
        lk = jax.random.split(keys[3 + l], 6)
        wq, bq = lin(lk[0], D_MODEL, D_MODEL)
        wk, bk = lin(lk[1], D_MODEL, D_MODEL)
        wv, bv = lin(lk[2], D_MODEL, D_MODEL)
        wo, bo = lin(lk[3], D_MODEL, D_MODEL)
        wf1, bf1 = lin(lk[4], D_MODEL, D_FF)
        wf2, bf2 = lin(lk[5], D_FF, D_MODEL)
        g1 = jnp.ones((1, D_MODEL), jnp.float32); be1 = jnp.zeros((1, D_MODEL), jnp.float32)
        g2 = jnp.ones((1, D_MODEL), jnp.float32); be2 = jnp.zeros((1, D_MODEL), jnp.float32)
        params += [wq, bq, wk, bk, wv, bv, wo, bo, wf1, bf1, wf2, bf2, g1, be1, g2, be2]

    w1o, b1o = lin(keys[1], D_MODEL, D_FF)
    w2o, b2o = lin(keys[2], D_FF, OUTPUT_DIM)
    params += [w1o, b1o, w2o, b2o]
    return params


def positional_encoding_row():
    """pe[0, :] for position 0 (general sin/cos formula)."""
    pos = 0.0
    div_term = jnp.exp(jnp.arange(0, D_MODEL, 2, dtype=jnp.float32)
                       * (-math.log(10000.0) / D_MODEL))
    pe = jnp.zeros((1, D_MODEL), jnp.float32)
    pe = pe.at[0, 0::2].set(jnp.sin(pos * div_term))
    pe = pe.at[0, 1::2].set(jnp.cos(pos * div_term))
    return pe


def pack_params(params, pe):
    """Fuse + pack the module parameters into two lane-dense slabs.

    Fusions (numerically equivalent for seq_len == 1, eval mode):
      * bi' = bi + pe[0]                         (positional encoding folded into input bias)
      * W_attn = Wv @ Wo,  b_attn = bv @ Wo + bo (softmax over a singleton == 1 -> ctx == V)

    Shared-tile packing (all matmuls stay full K=128; junk output lanes are masked in-kernel):
      head tile:    Wi  at rows[0:16)  cols[0:32)   | W1o at rows[0:32) cols[64:128)
                    W2o at rows[64:128) cols[0:8)
      layer tile l: W_attn rows[0:32) cols[0:32)    | Wf1 rows[0:32) cols[64:128)
                    Wf2    rows[64:128) cols[0:32)
    Weight slab is bf16 (f32 accumulation in-kernel); bias slab stays f32.
    """
    def place(tile, w, r, c):
        return tile.at[r:r + w.shape[0], c:c + w.shape[1]].set(w)

    def row(v, off=0):
        r = jnp.zeros((1, LANES), jnp.float32)
        return r.at[0, off:off + v.shape[-1]].set(v.reshape(-1))

    it = iter(params)
    wi = next(it); bi = next(it)
    layer_ps = [tuple(next(it) for _ in range(PARAMS_PER_LAYER)) for _ in range(NUM_LAYERS)]
    w1o = next(it); b1o = next(it); w2o = next(it); b2o = next(it)

    head = jnp.zeros((LANES, LANES), jnp.float32)
    head = place(head, wi, 0, 0)
    head = place(head, w1o, 0, FF_OFF)
    head = place(head, w2o, FF_OFF, 0)

    w_blocks = [head]
    b_rows = [row(bi + pe)]                                    # bi' = bi + pe[0]

    for (wq, bq, wk, bk, wv, bv, wo, bo,
         wf1, bf1, wf2, bf2, g1, be1, g2, be2) in layer_ps:
        w_attn = wv @ wo
        b_attn = bv @ wo + bo
        t = jnp.zeros((LANES, LANES), jnp.float32)
        t = place(t, w_attn, 0, 0)
        t = place(t, wf1, 0, FF_OFF)
        t = place(t, wf2, FF_OFF, 0)
        w_blocks.append(t)
        b_rows += [row(b_attn), row(bf1, FF_OFF), row(bf2),
                   row(g1), row(be1), row(g2), row(be2)]

    b_rows += [row(b1o, FF_OFF), row(b2o)]

    w_slab = jnp.concatenate(w_blocks, axis=0).astype(jnp.bfloat16)   # [3*128, 128] bf16
    b_slab = jnp.concatenate(b_rows, axis=0)                          # [17, 128] f32
    pad_rows = (-b_slab.shape[0]) % 8
    if pad_rows:
        b_slab = jnp.pad(b_slab, ((0, pad_rows), (0, 0)))             # sublane-align -> [24,128]
    return w_slab, b_slab


# ---------------------------------------------------------------------------
# Wrapper
# ---------------------------------------------------------------------------
def _round_up(n, m):
    return ((n + m - 1) // m) * m


def transformer2_forward(x, w_slab, b_slab, *, tile_b=256):
    """x: [batch, INPUT_DIM] f32 -> [batch, OUTPUT_DIM] f32."""
    n = x.shape[0]
    tile_b = max(8, min(int(tile_b), _round_up(n, 8)))
    tile_b = _round_up(tile_b, 8)
    n_pad = _round_up(n, tile_b)

    # lane-dense input slab: pad features to 128 lanes and batch to the tile multiple.
    x_pad = jnp.zeros((n_pad, LANES), jnp.float32).at[:n, :INPUT_DIM].set(x)

    grid = (n_pad // tile_b,)
    out = pl.pallas_call(
        transformer2_kernel,
        out_shape=jax.ShapeDtypeStruct((n_pad, LANES), jnp.float32),
        grid_spec=pltpu.PrefetchScalarGridSpec(
            num_scalar_prefetch=0,
            grid=grid,
            in_specs=[
                pl.BlockSpec((tile_b, LANES), lambda i: (i, 0)),       # batch tile
                pl.BlockSpec((W_ROWS, LANES), lambda i: (0, 0)),       # weights: VMEM-resident
                pl.BlockSpec((b_slab.shape[0], LANES), lambda i: (0, 0)),
            ],
            out_specs=pl.BlockSpec((tile_b, LANES), lambda i: (i, 0)),
        ),
        compiler_params=pltpu.CompilerParams(
            dimension_semantics=("parallel",)),                         # 2nd TC on v7x
    )(x_pad, w_slab, b_slab)
    return out[:n, :OUTPUT_DIM]


# ---------------------------------------------------------------------------
# Pure-JAX reference (mirrors the PyTorch eval-mode forward, unfused, f32)
# ---------------------------------------------------------------------------
def _layer_norm_ref(x, gamma, beta):
    mean = jnp.mean(x, axis=-1, keepdims=True)
    var = jnp.mean((x - mean) ** 2, axis=-1, keepdims=True)    # biased var (torch LayerNorm)
    return (x - mean) * jax.lax.rsqrt(var + LN_EPS) * gamma + beta


def transformer2_reference(x, pe, params):
    n = x.shape[0]
    it = iter(params)
    wi = next(it); bi = next(it)
    h = x @ wi + bi + pe
    for _ in range(NUM_LAYERS):
        (wq, bq, wk, bk, wv, bv, wo, bo,
         wf1, bf1, wf2, bf2, g1, be1, g2, be2) = (next(it) for _ in range(PARAMS_PER_LAYER))
        q = h @ wq + bq
        k = h @ wk + bk
        v = h @ wv + bv
        qh = q.reshape(n, N_HEADS, 1, D_K)
        kh = k.reshape(n, N_HEADS, 1, D_K)
        vh = v.reshape(n, N_HEADS, 1, D_K)
        scores = jnp.einsum("bhqd,bhkd->bhqk", qh, kh) / math.sqrt(D_K)
        attn = jax.nn.softmax(scores, axis=-1)
        ctx = jnp.einsum("bhqk,bhkd->bhqd", attn, vh).reshape(n, D_MODEL)
        attn_out = ctx @ wo + bo
        h = _layer_norm_ref(h + attn_out, g1, be1)
        ff = jax.nn.relu(h @ wf1 + bf1) @ wf2 + bf2
        h = _layer_norm_ref(h + ff, g2, be2)
    w1o = next(it); b1o = next(it); w2o = next(it); b2o = next(it)
    return jax.nn.relu(h @ w1o + b1o) @ w2o + b2o


if __name__ == "__main__":
    key = jax.random.PRNGKey(0)
    kx, kp = jax.random.split(key)
    batch = 64
    x = jax.random.normal(kx, (batch, INPUT_DIM), jnp.float32)
    params = make_params(kp)
    pe = positional_encoding_row()

    w_slab, b_slab = pack_params(params, pe)

    # tile_b=32 -> grid of 2 batch tiles, exercising the pipelined/parallel batch axis.
    out = transformer2_forward(x, w_slab, b_slab, tile_b=32)
    out = jax.block_until_ready(out)

    ref = transformer2_reference(x, pe, params)
    assert out.shape == (batch, OUTPUT_DIM)
    # tolerance loosened vs pure-f32 because the weight slab / dot operands are bf16
    # (accumulation stays f32); a packing/logic bug would produce O(0.1..1) errors.
    max_err = float(jnp.max(jnp.abs(out - ref)))
    assert jnp.allclose(out, ref, atol=1e-2, rtol=1e-2), f"mismatch vs reference, max_err={max_err}"
    print("KERNEL_OK")
</pallas_src>

<mosaic_0001>
module attributes {stable_mosaic.version = 11 : i64} {
  func.func @transformer2_kernel(%arg0: i32, %arg1: memref<32x128xf32, #tpu.memory_space<vmem>>, %arg2: memref<384x128xbf16, #tpu.memory_space<vmem>>, %arg3: memref<24x128xf32, #tpu.memory_space<vmem>>, %arg4: memref<32x128xf32, #tpu.memory_space<vmem>>) attributes {dimension_semantics = [#tpu.dimension_semantics<parallel>], iteration_bounds = array<i64: 2>, scalar_prefetch = 0 : i64, scratch_operands = 0 : i64, tpu.core_type = #tpu.core_type<tc>, window_params = [{transform_indices = @transform_0, window_bounds = array<i64: 32, 128>}, {pipeline_mode = #tpu.pipeline_mode<synchronous>, transform_indices = @transform_1, window_bounds = array<i64: 384, 128>}, {pipeline_mode = #tpu.pipeline_mode<synchronous>, transform_indices = @transform_2, window_bounds = array<i64: 24, 128>}, {transform_indices = @transform_3, window_bounds = array<i64: 32, 128>}]} {
    %0 = tpu.iota {dimensions = array<i32: 1>} : vector<1x128xi32>
    %c32_i32 = arith.constant 32 : i32
    %1 = vector.broadcast %c32_i32 : i32 to vector<1x128xi32>
    %2 = arith.cmpi slt, %0, %1 : vector<1x128xi32>
    %3 = arith.extui %2 : vector<1x128xi1> to vector<1x128xi32>
    %4 = arith.sitofp %3 : vector<1x128xi32> to vector<1x128xf32>
    %c64_i32 = arith.constant 64 : i32
    %5 = vector.broadcast %c64_i32 : i32 to vector<1x128xi32>
    %6 = arith.cmpi sge, %0, %5 : vector<1x128xi32>
    %7 = arith.extui %6 : vector<1x128xi1> to vector<1x128xi32>
    %8 = arith.sitofp %7 : vector<1x128xi32> to vector<1x128xf32>
    %c0 = arith.constant 0 : index
    %c0_0 = arith.constant 0 : index
    %9 = vector.load %arg2[%c0, %c0_0] : memref<384x128xbf16, #tpu.memory_space<vmem>>, vector<128x128xbf16>
    %c0_1 = arith.constant 0 : index
    %c0_2 = arith.constant 0 : index
    %10 = vector.load %arg1[%c0_1, %c0_2] : memref<32x128xf32, #tpu.memory_space<vmem>>, vector<32x128xf32>
    %11 = arith.truncf %10 : vector<32x128xf32> to vector<32x128xbf16>
    %cst = arith.constant dense<0.000000e+00> : vector<32x128xf32>
    %12 = tpu.matmul %11, %9, %cst {dimension_numbers = #tpu.dot_dimension_numbers<[1], [0], [0], [1], [0, 0, 1, 1], [], []>} : vector<32x128xbf16>, vector<128x128xbf16>, vector<32x128xf32> -> vector<32x128xf32>
    %c0_3 = arith.constant 0 : index
    %c0_4 = arith.constant 0 : index
    %13 = vector.load %arg3[%c0_3, %c0_4] : memref<24x128xf32, #tpu.memory_space<vmem>>, vector<1x128xf32>
    %14 = vector.broadcast %13 : vector<1x128xf32> to vector<32x128xf32>
    %15 = arith.addf %12, %14 : vector<32x128xf32>
    %16 = vector.broadcast %4 : vector<1x128xf32> to vector<32x128xf32>
    %17 = arith.mulf %15, %16 : vector<32x128xf32>
    %c128 = arith.constant 128 : index
    %c0_5 = arith.constant 0 : index
    %18 = vector.load %arg2[%c128, %c0_5] : memref<384x128xbf16, #tpu.memory_space<vmem>>, vector<128x128xbf16>
    %19 = arith.truncf %17 : vector<32x128xf32> to vector<32x128xbf16>
    %cst_6 = arith.constant dense<0.000000e+00> : vector<32x128xf32>
    %20 = tpu.matmul %19, %18, %cst_6 {dimension_numbers = #tpu.dot_dimension_numbers<[1], [0], [0], [1], [0, 0, 1, 1], [], []>} : vector<32x128xbf16>, vector<128x128xbf16>, vector<32x128xf32> -> vector<32x128xf32>
    %c1 = arith.constant 1 : index
    %c0_7 = arith.constant 0 : index
    %21 = vector.load %arg3[%c1, %c0_7] : memref<24x128xf32, #tpu.memory_space<vmem>>, vector<1x128xf32>
    %22 = vector.broadcast %21 : vector<1x128xf32> to vector<32x128xf32>
    %23 = arith.addf %20, %22 : vector<32x128xf32>
    %24 = vector.broadcast %4 : vector<1x128xf32> to vector<32x128xf32>
    %25 = arith.mulf %23, %24 : vector<32x128xf32>
    %26 = arith.addf %17, %25 : vector<32x128xf32>
    %c4 = arith.constant 4 : index
    %c0_8 = arith.constant 0 : index
    %27 = vector.load %arg3[%c4, %c0_8] : memref<24x128xf32, #tpu.memory_space<vmem>>, vector<1x128xf32>
    %c5 = arith.constant 5 : index
    %c0_9 = arith.constant 0 : index
    %28 = vector.load %arg3[%c5, %c0_9] : memref<24x128xf32, #tpu.memory_space<vmem>>, vector<1x128xf32>
    %cst_10 = arith.constant dense<0.000000e+00> : vector<32xf32>
    %29 = vector.multi_reduction <add>, %26, %cst_10 [1] : vector<32x128xf32> to vector<32xf32>
    %30 = vector.shape_cast %29 : vector<32xf32> to vector<32x1xf32>
    %cst_11 = arith.constant 3.125000e-02 : f32
    %31 = vector.broadcast %cst_11 : f32 to vector<32x1xf32>
    %32 = arith.mulf %30, %31 : vector<32x1xf32>
    %33 = vector.broadcast %32 : vector<32x1xf32> to vector<32x128xf32>
    %34 = arith.subf %26, %33 : vector<32x128xf32>
    %35 = vector.broadcast %4 : vector<1x128xf32> to vector<32x128xf32>
    %36 = arith.mulf %34, %35 : vector<32x128xf32>
    %37 = arith.mulf %36, %36 : vector<32x128xf32>
    %cst_12 = arith.constant dense<0.000000e+00> : vector<32xf32>
    %38 = vector.multi_reduction <add>, %37, %cst_12 [1] : vector<32x128xf32> to vector<32xf32>
    %39 = vector.shape_cast %38 : vector<32xf32> to vector<32x1xf32>
    %cst_13 = arith.constant 3.125000e-02 : f32
    %40 = vector.broadcast %cst_13 : f32 to vector<32x1xf32>
    %41 = arith.mulf %39, %40 : vector<32x1xf32>
    %cst_14 = arith.constant 9.99999974E-6 : f32
    %42 = vector.broadcast %cst_14 : f32 to vector<32x1xf32>
    %43 = arith.addf %41, %42 : vector<32x1xf32>
    %44 = math.rsqrt %43 : vector<32x1xf32>
    %45 = vector.broadcast %44 : vector<32x1xf32> to vector<32x128xf32>
    %46 = arith.mulf %36, %45 : vector<32x128xf32>
    %47 = vector.broadcast %27 : vector<1x128xf32> to vector<32x128xf32>
    %48 = arith.mulf %46, %47 : vector<32x128xf32>
    %49 = vector.broadcast %28 : vector<1x128xf32> to vector<32x128xf32>
    %50 = arith.addf %48, %49 : vector<32x128xf32>
    %51 = arith.truncf %50 : vector<32x128xf32> to vector<32x128xbf16>
    %cst_15 = arith.constant dense<0.000000e+00> : vector<32x128xf32>
    %52 = tpu.matmul %51, %18, %cst_15 {dimension_numbers = #tpu.dot_dimension_numbers<[1], [0], [0], [1], [0, 0, 1, 1], [], []>} : vector<32x128xbf16>, vector<128x128xbf16>, vector<32x128xf32> -> vector<32x128xf32>
    %c2 = arith.constant 2 : index
    %c0_16 = arith.constant 0 : index
    %53 = vector.load %arg3[%c2, %c0_16] : memref<24x128xf32, #tpu.memory_space<vmem>>, vector<1x128xf32>
    %54 = vector.broadcast %53 : vector<1x128xf32> to vector<32x128xf32>
    %55 = arith.addf %52, %54 : vector<32x128xf32>
    %cst_17 = arith.constant 0.000000e+00 : f32
    %56 = vector.broadcast %cst_17 : f32 to vector<32x128xf32>
    %57 = arith.maximumf %55, %56 : vector<32x128xf32>
    %58 = vector.broadcast %8 : vector<1x128xf32> to vector<32x128xf32>
    %59 = arith.mulf %57, %58 : vector<32x128xf32>
    %60 = arith.truncf %59 : vector<32x128xf32> to vector<32x128xbf16>
    %cst_18 = arith.constant dense<0.000000e+00> : vector<32x128xf32>
    %61 = tpu.matmul %60, %18, %cst_18 {dimension_numbers = #tpu.dot_dimension_numbers<[1], [0], [0], [1], [0, 0, 1, 1], [], []>} : vector<32x128xbf16>, vector<128x128xbf16>, vector<32x128xf32> -> vector<32x128xf32>
    %c3 = arith.constant 3 : index
    %c0_19 = arith.constant 0 : index
    %62 = vector.load %arg3[%c3, %c0_19] : memref<24x128xf32, #tpu.memory_space<vmem>>, vector<1x128xf32>
    %63 = vector.broadcast %62 : vector<1x128xf32> to vector<32x128xf32>
    %64 = arith.addf %61, %63 : vector<32x128xf32>
    %65 = arith.addf %50, %64 : vector<32x128xf32>
    %c6 = arith.constant 6 : index
    %c0_20 = arith.constant 0 : index
    %66 = vector.load %arg3[%c6, %c0_20] : memref<24x128xf32, #tpu.memory_space<vmem>>, vector<1x128xf32>
    %c7 = arith.constant 7 : index
    %c0_21 = arith.constant 0 : index
    %67 = vector.load %arg3[%c7, %c0_21] : memref<24x128xf32, #tpu.memory_space<vmem>>, vector<1x128xf32>
    %cst_22 = arith.constant dense<0.000000e+00> : vector<32xf32>
    %68 = vector.multi_reduction <add>, %65, %cst_22 [1] : vector<32x128xf32> to vector<32xf32>
    %69 = vector.shape_cast %68 : vector<32xf32> to vector<32x1xf32>
    %cst_23 = arith.constant 3.125000e-02 : f32
    %70 = vector.broadcast %cst_23 : f32 to vector<32x1xf32>
    %71 = arith.mulf %69, %70 : vector<32x1xf32>
    %72 = vector.broadcast %71 : vector<32x1xf32> to vector<32x128xf32>
    %73 = arith.subf %65, %72 : vector<32x128xf32>
    %74 = vector.broadcast %4 : vector<1x128xf32> to vector<32x128xf32>
    %75 = arith.mulf %73, %74 : vector<32x128xf32>
    %76 = arith.mulf %75, %75 : vector<32x128xf32>
    %cst_24 = arith.constant dense<0.000000e+00> : vector<32xf32>
    %77 = vector.multi_reduction <add>, %76, %cst_24 [1] : vector<32x128xf32> to vector<32xf32>
    %78 = vector.shape_cast %77 : vector<32xf32> to vector<32x1xf32>
    %cst_25 = arith.constant 3.125000e-02 : f32
    %79 = vector.broadcast %cst_25 : f32 to vector<32x1xf32>
    %80 = arith.mulf %78, %79 : vector<32x1xf32>
    %cst_26 = arith.constant 9.99999974E-6 : f32
    %81 = vector.broadcast %cst_26 : f32 to vector<32x1xf32>
    %82 = arith.addf %80, %81 : vector<32x1xf32>
    %83 = math.rsqrt %82 : vector<32x1xf32>
    %84 = vector.broadcast %83 : vector<32x1xf32> to vector<32x128xf32>
    %85 = arith.mulf %75, %84 : vector<32x128xf32>
    %86 = vector.broadcast %66 : vector<1x128xf32> to vector<32x128xf32>
    %87 = arith.mulf %85, %86 : vector<32x128xf32>
    %88 = vector.broadcast %67 : vector<1x128xf32> to vector<32x128xf32>
    %89 = arith.addf %87, %88 : vector<32x128xf32>
    %c256 = arith.constant 256 : index
    %c0_27 = arith.constant 0 : index
    %90 = vector.load %arg2[%c256, %c0_27] : memref<384x128xbf16, #tpu.memory_space<vmem>>, vector<128x128xbf16>
    %91 = arith.truncf %89 : vector<32x128xf32> to vector<32x128xbf16>
    %cst_28 = arith.constant dense<0.000000e+00> : vector<32x128xf32>
    %92 = tpu.matmul %91, %90, %cst_28 {dimension_numbers = #tpu.dot_dimension_numbers<[1], [0], [0], [1], [0, 0, 1, 1], [], []>} : vector<32x128xbf16>, vector<128x128xbf16>, vector<32x128xf32> -> vector<32x128xf32>
    %c8 = arith.constant 8 : index
    %c0_29 = arith.constant 0 : index
    %93 = vector.load %arg3[%c8, %c0_29] : memref<24x128xf32, #tpu.memory_space<vmem>>, vector<1x128xf32>
    %94 = vector.broadcast %93 : vector<1x128xf32> to vector<32x128xf32>
    %95 = arith.addf %92, %94 : vector<32x128xf32>
    %96 = vector.broadcast %4 : vector<1x128xf32> to vector<32x128xf32>
    %97 = arith.mulf %95, %96 : vector<32x128xf32>
    %98 = arith.addf %89, %97 : vector<32x128xf32>
    %c11 = arith.constant 11 : index
    %c0_30 = arith.constant 0 : index
    %99 = vector.load %arg3[%c11, %c0_30] : memref<24x128xf32, #tpu.memory_space<vmem>>, vector<1x128xf32>
    %c12 = arith.constant 12 : index
    %c0_31 = arith.constant 0 : index
    %100 = vector.load %arg3[%c12, %c0_31] : memref<24x128xf32, #tpu.memory_space<vmem>>, vector<1x128xf32>
    %cst_32 = arith.constant dense<0.000000e+00> : vector<32xf32>
    %101 = vector.multi_reduction <add>, %98, %cst_32 [1] : vector<32x128xf32> to vector<32xf32>
    %102 = vector.shape_cast %101 : vector<32xf32> to vector<32x1xf32>
    %cst_33 = arith.constant 3.125000e-02 : f32
    %103 = vector.broadcast %cst_33 : f32 to vector<32x1xf32>
    %104 = arith.mulf %102, %103 : vector<32x1xf32>
    %105 = vector.broadcast %104 : vector<32x1xf32> to vector<32x128xf32>
    %106 = arith.subf %98, %105 : vector<32x128xf32>
    %107 = vector.broadcast %4 : vector<1x128xf32> to vector<32x128xf32>
    %108 = arith.mulf %106, %107 : vector<32x128xf32>
    %109 = arith.mulf %108, %108 : vector<32x128xf32>
    %cst_34 = arith.constant dense<0.000000e+00> : vector<32xf32>
    %110 = vector.multi_reduction <add>, %109, %cst_34 [1] : vector<32x128xf32> to vector<32xf32>
    %111 = vector.shape_cast %110 : vector<32xf32> to vector<32x1xf32>
    %cst_35 = arith.constant 3.125000e-02 : f32
    %112 = vector.broadcast %cst_35 : f32 to vector<32x1xf32>
    %113 = arith.mulf %111, %112 : vector<32x1xf32>
    %cst_36 = arith.constant 9.99999974E-6 : f32
    %114 = vector.broadcast %cst_36 : f32 to vector<32x1xf32>
    %115 = arith.addf %113, %114 : vector<32x1xf32>
    %116 = math.rsqrt %115 : vector<32x1xf32>
    %117 = vector.broadcast %116 : vector<32x1xf32> to vector<32x128xf32>
    %118 = arith.mulf %108, %117 : vector<32x128xf32>
    %119 = vector.broadcast %99 : vector<1x128xf32> to vector<32x128xf32>
    %120 = arith.mulf %118, %119 : vector<32x128xf32>
    %121 = vector.broadcast %100 : vector<1x128xf32> to vector<32x128xf32>
    %122 = arith.addf %120, %121 : vector<32x128xf32>
    %123 = arith.truncf %122 : vector<32x128xf32> to vector<32x128xbf16>
    %cst_37 = arith.constant dense<0.000000e+00> : vector<32x128xf32>
    %124 = tpu.matmul %123, %90, %cst_37 {dimension_numbers = #tpu.dot_dimension_numbers<[1], [0], [0], [1], [0, 0, 1, 1], [], []>} : vector<32x128xbf16>, vector<128x128xbf16>, vector<32x128xf32> -> vector<32x128xf32>
    %c9 = arith.constant 9 : index
    %c0_38 = arith.constant 0 : index
    %125 = vector.load %arg3[%c9, %c0_38] : memref<24x128xf32, #tpu.memory_space<vmem>>, vector<1x128xf32>
    %126 = vector.broadcast %125 : vector<1x128xf32> to vector<32x128xf32>
    %127 = arith.addf %124, %126 : vector<32x128xf32>
    %cst_39 = arith.constant 0.000000e+00 : f32
    %128 = vector.broadcast %cst_39 : f32 to vector<32x128xf32>
    %129 = arith.maximumf %127, %128 : vector<32x128xf32>
    %130 = vector.broadcast %8 : vector<1x128xf32> to vector<32x128xf32>
    %131 = arith.mulf %129, %130 : vector<32x128xf32>
    %132 = arith.truncf %131 : vector<32x128xf32> to vector<32x128xbf16>
    %cst_40 = arith.constant dense<0.000000e+00> : vector<32x128xf32>
    %133 = tpu.matmul %132, %90, %cst_40 {dimension_numbers = #tpu.dot_dimension_numbers<[1], [0], [0], [1], [0, 0, 1, 1], [], []>} : vector<32x128xbf16>, vector<128x128xbf16>, vector<32x128xf32> -> vector<32x128xf32>
    %c10 = arith.constant 10 : index
    %c0_41 = arith.constant 0 : index
    %134 = vector.load %arg3[%c10, %c0_41] : memref<24x128xf32, #tpu.memory_space<vmem>>, vector<1x128xf32>
    %135 = vector.broadcast %134 : vector<1x128xf32> to vector<32x128xf32>
    %136 = arith.addf %133, %135 : vector<32x128xf32>
    %137 = arith.addf %122, %136 : vector<32x128xf32>
    %c13 = arith.constant 13 : index
    %c0_42 = arith.constant 0 : index
    %138 = vector.load %arg3[%c13, %c0_42] : memref<24x128xf32, #tpu.memory_space<vmem>>, vector<1x128xf32>
    %c14 = arith.constant 14 : index
    %c0_43 = arith.constant 0 : index
    %139 = vector.load %arg3[%c14, %c0_43] : memref<24x128xf32, #tpu.memory_space<vmem>>, vector<1x128xf32>
    %cst_44 = arith.constant dense<0.000000e+00> : vector<32xf32>
    %140 = vector.multi_reduction <add>, %137, %cst_44 [1] : vector<32x128xf32> to vector<32xf32>
    %141 = vector.shape_cast %140 : vector<32xf32> to vector<32x1xf32>
    %cst_45 = arith.constant 3.125000e-02 : f32
    %142 = vector.broadcast %cst_45 : f32 to vector<32x1xf32>
    %143 = arith.mulf %141, %142 : vector<32x1xf32>
    %144 = vector.broadcast %143 : vector<32x1xf32> to vector<32x128xf32>
    %145 = arith.subf %137, %144 : vector<32x128xf32>
    %146 = vector.broadcast %4 : vector<1x128xf32> to vector<32x128xf32>
    %147 = arith.mulf %145, %146 : vector<32x128xf32>
    %148 = arith.mulf %147, %147 : vector<32x128xf32>
    %cst_46 = arith.constant dense<0.000000e+00> : vector<32xf32>
    %149 = vector.multi_reduction <add>, %148, %cst_46 [1] : vector<32x128xf32> to vector<32xf32>
    %150 = vector.shape_cast %149 : vector<32xf32> to vector<32x1xf32>
    %cst_47 = arith.constant 3.125000e-02 : f32
    %151 = vector.broadcast %cst_47 : f32 to vector<32x1xf32>
    %152 = arith.mulf %150, %151 : vector<32x1xf32>
    %cst_48 = arith.constant 9.99999974E-6 : f32
    %153 = vector.broadcast %cst_48 : f32 to vector<32x1xf32>
    %154 = arith.addf %152, %153 : vector<32x1xf32>
    %155 = math.rsqrt %154 : vector<32x1xf32>
    %156 = vector.broadcast %155 : vector<32x1xf32> to vector<32x128xf32>
    %157 = arith.mulf %147, %156 : vector<32x128xf32>
    %158 = vector.broadcast %138 : vector<1x128xf32> to vector<32x128xf32>
    %159 = arith.mulf %157, %158 : vector<32x128xf32>
    %160 = vector.broadcast %139 : vector<1x128xf32> to vector<32x128xf32>
    %161 = arith.addf %159, %160 : vector<32x128xf32>
    %162 = arith.truncf %161 : vector<32x128xf32> to vector<32x128xbf16>
    %cst_49 = arith.constant dense<0.000000e+00> : vector<32x128xf32>
    %163 = tpu.matmul %162, %9, %cst_49 {dimension_numbers = #tpu.dot_dimension_numbers<[1], [0], [0], [1], [0, 0, 1, 1], [], []>} : vector<32x128xbf16>, vector<128x128xbf16>, vector<32x128xf32> -> vector<32x128xf32>
    %c15 = arith.constant 15 : index
    %c0_50 = arith.constant 0 : index
    %164 = vector.load %arg3[%c15, %c0_50] : memref<24x128xf32, #tpu.memory_space<vmem>>, vector<1x128xf32>
    %165 = vector.broadcast %164 : vector<1x128xf32> to vector<32x128xf32>
    %166 = arith.addf %163, %165 : vector<32x128xf32>
    %cst_51 = arith.constant 0.000000e+00 : f32
    %167 = vector.broadcast %cst_51 : f32 to vector<32x128xf32>
    %168 = arith.maximumf %166, %167 : vector<32x128xf32>
    %169 = vector.broadcast %8 : vector<1x128xf32> to vector<32x128xf32>
    %170 = arith.mulf %168, %169 : vector<32x128xf32>
    %171 = arith.truncf %170 : vector<32x128xf32> to vector<32x128xbf16>
    %cst_52 = arith.constant dense<0.000000e+00> : vector<32x128xf32>
    %172 = tpu.matmul %171, %9, %cst_52 {dimension_numbers = #tpu.dot_dimension_numbers<[1], [0], [0], [1], [0, 0, 1, 1], [], []>} : vector<32x128xbf16>, vector<128x128xbf16>, vector<32x128xf32> -> vector<32x128xf32>
    %c16 = arith.constant 16 : index
    %c0_53 = arith.constant 0 : index
    %173 = vector.load %arg3[%c16, %c0_53] : memref<24x128xf32, #tpu.memory_space<vmem>>, vector<1x128xf32>
    %174 = vector.broadcast %173 : vector<1x128xf32> to vector<32x128xf32>
    %175 = arith.addf %172, %174 : vector<32x128xf32>
    %c0_54 = arith.constant 0 : index
    %c0_55 = arith.constant 0 : index
    %176 = vector.load %arg4[%c0_54, %c0_55] : memref<32x128xf32, #tpu.memory_space<vmem>>, vector<32x128xf32>
    tpu.vector_store %arg4[%c0_54, %c0_55], %175 {strides = array<i32>} : memref<32x128xf32, #tpu.memory_space<vmem>>, vector<32x128xf32>,
    return
  }
  func.func @transform_0(%arg0: i32) -> (i32, i32) {
    %c0_i32 = arith.constant 0 : i32
    %c0_i32_0 = arith.constant 0 : i32
    return %arg0, %c0_i32 : i32, i32
  }
  func.func @transform_1(%arg0: i32) -> (i32, i32) {
    %c0_i32 = arith.constant 0 : i32
    %c0_i32_0 = arith.constant 0 : i32
    %c0_i32_1 = arith.constant 0 : i32
    return %c0_i32, %c0_i32_0 : i32, i32
  }
  func.func @transform_2(%arg0: i32) -> (i32, i32) {
    %c0_i32 = arith.constant 0 : i32
    %c0_i32_0 = arith.constant 0 : i32
    %c0_i32_1 = arith.constant 0 : i32
    return %c0_i32, %c0_i32_0 : i32, i32
  }
  func.func @transform_3(%arg0: i32) -> (i32, i32) {
    %c0_i32 = arith.constant 0 : i32
    %c0_i32_0 = arith.constant 0 : i32
    return %arg0, %c0_i32 : i32, i32
  }
}

</mosaic_0001>

<llo_original>
// kernel: tpu_custom_call.1
$region0: #{tpu_custom_call.1}
  #allocation0 [shape = 'u32[]', space=smem, size = 0x4, offset = 0x4, fixed_abs, tag = 'smem constant byte address 0x4 - core index']
  #allocation1 [shape = 'u32[144,128]{1,0:T(1,128)}', space=vmem, size = 0x12000, scoped, tag = 'internal scratch']
  %s0 = inlined_call_operand.hbm [shape: f32[64,128], index: 0, kind: input, shape index: {}]
  %s1 = inlined_call_operand.hbm [shape: bf16[384,128], index: 1, kind: input, shape index: {}]
  %s2 = inlined_call_operand.hbm [shape: f32[24,128], index: 2, kind: input, shape index: {}]
  %s3 = inlined_call_operand.hbm [shape: f32[64,128], index: 3, kind: output, shape index: {}]
  %s4 = sld [smem:[#allocation0]]
  $region57: #{tpu_custom_call.1} parent=0
    _
  %s6 = ssub.s32 1, %s4
  %s7 = scalar_select 0, %s6, %s4
  $region1: #{tpu_custom_call.1} parent=0
    #allocation2 [shape = 'u8[32768]{0}', space=vmem, size = 0x8000, scoped, tag = 'input window, operand 0']
    #allocation3 [shape = 's32[2]{0}', space=sflag, size = 0x8, scoped, tag = 'scoped memory for tpu_custom_call.1']
    #allocation4 [shape = 's32[2]{0}', space=sflag, size = 0x8, scoped, tag = 'scoped memory for tpu_custom_call.1']
    #allocation5 [shape = 'u8[98304]{0}', space=vmem, size = 0x18000, scoped, tag = 'input window, operand 1, single buffered']
    #allocation6 [shape = 's32[1]{0}', space=sflag, size = 0x4, scoped, tag = 'scoped memory for tpu_custom_call.1']
    #allocation7 [shape = 'u8[12288]{0}', space=vmem, size = 0x3000, scoped, tag = 'input window, operand 2, single buffered']
    #allocation8 [shape = 'u8[32768]{0}', space=vmem, size = 0x8000, scoped, tag = 'output window, operand 0']
    %8 = vsyncpa [#allocation3], 0
    %s9 = scalar_lea.sflag [#allocation3], 1
    %10 = vsyncpa %s9, 0
    %11 = vsyncpa [#allocation6], 0
    %12 = vsyncpa [#allocation4], 0
    %s13 = scalar_lea.sflag [#allocation4], 1
    %14 = vsyncpa %s13, 0
    loop: start=0, step=1, limit=4
    $region2: #{tpu_custom_call.1} parent=1 // loop_pre_header
      _
    $region3: #{tpu_custom_call.1} parent=1 // loop_header
      %s16 = sphi 0, %s20
      %p17 = scmp.ge.s32.totalorder %s16, 4
      %s26 = sphi 0, %s28
      %s29 = sphi 0, %s26
      %s30 = sphi 0, %s29
      %s46 = sphi 0, %s30
      %s50 = sphi 0, %s50
      %s52 = sphi 0, %s50
      %s53 = sphi 0, %s52
      %s67 = sphi 0, %s53
      %s71 = sphi 0, %s71
      %s73 = sphi 0, %s71
      %s74 = sphi 0, %s73
      %s88 = sphi 0, %s74
      %s94 = sphi 0, %s96
      %s97 = sphi 0, %s94
      %s98 = sphi 0, %s97
      %s114 = sphi 0, %s98
    $region4: #{tpu_custom_call.1} parent=1 // loop_header_branch
      %19 = sbr.rel (%p17) target = $region8
    $region5: #{tpu_custom_call.1} parent=1 // loop_body
      %s21 = ssub.s32 %s16, 1
      %s22 = ssub.s32 %s16, 2
      %s23 = sadd.s32 %s16, 1
      %s24 = ssub.s32 %s16, %s23
      %p25 = scmp.eq.s32.totalorder %s24, 0
      %s27 = sadd.s32 %s26, 1
      %s28 = scalar_select %p25, %s26, %s27
      %p31 = pneg %p25
      %p32 = scmp.eq.s32.totalorder %s16, 1
      %p33 = por %p31, %p32
      %p34 = scmp.ne.s32.totalorder %s26, %s29
      %p35 = scmp.eq.s32.totalorder %s16, 0
      %p36 = por %p34, %p35
      %p37 = scmp.ne.s32.totalorder %s26, %s29
      %p38 = scmp.eq.s32.totalorder %s21, 1
      %p39 = por %p37, %p38
      %p40 = scmp.ne.s32.totalorder %s29, %s30
      %p41 = scmp.eq.s32.totalorder %s21, 0
      %p42 = por %p40, %p41
      %p43 = scmp.ne.s32.totalorder %s29, %s30
      %p44 = scmp.eq.s32.totalorder %s22, 1
      %p45 = por %p43, %p44
      %p47 = scmp.ne.s32.totalorder %s30, %s46
      %p48 = scmp.eq.s32.totalorder %s22, 0
      %p49 = por %p47, %p48
      %s51 = sadd.s32 %s50, 1
      %p54 = scmp.eq.s32.totalorder %s16, 1
      %p55 = scmp.ne.s32.totalorder %s50, %s52
      %p56 = scmp.eq.s32.totalorder %s16, 0
      %p57 = por %p55, %p56
      %p58 = scmp.ne.s32.totalorder %s50, %s52
      %p59 = scmp.eq.s32.totalorder %s21, 1
      %p60 = por %p58, %p59
      %p61 = scmp.ne.s32.totalorder %s52, %s53
      %p62 = scmp.eq.s32.totalorder %s21, 0
      %p63 = por %p61, %p62
      %p64 = scmp.ne.s32.totalorder %s52, %s53
      %p65 = scmp.eq.s32.totalorder %s22, 1
      %p66 = por %p64, %p65
      %p68 = scmp.ne.s32.totalorder %s53, %s67
      %p69 = scmp.eq.s32.totalorder %s22, 0
      %p70 = por %p68, %p69
      %s72 = sadd.s32 %s71, 1
      %p75 = scmp.eq.s32.totalorder %s16, 1
      %p76 = scmp.ne.s32.totalorder %s71, %s73
      %p77 = scmp.eq.s32.totalorder %s16, 0
      %p78 = por %p76, %p77
      %p79 = scmp.ne.s32.totalorder %s71, %s73
      %p80 = scmp.eq.s32.totalorder %s21, 1
      %p81 = por %p79, %p80
      %p82 = scmp.ne.s32.totalorder %s73, %s74
      %p83 = scmp.eq.s32.totalorder %s21, 0
      %p84 = por %p82, %p83
      %p85 = scmp.ne.s32.totalorder %s73, %s74
      %p86 = scmp.eq.s32.totalorder %s22, 1
      %p87 = por %p85, %p86
      %p89 = scmp.ne.s32.totalorder %s74, %s88
      %p90 = scmp.eq.s32.totalorder %s22, 0
      %p91 = por %p89, %p90
      %s92 = ssub.s32 %s16, %s23
      %p93 = scmp.eq.s32.totalorder %s92, 0
      %s95 = sadd.s32 %s94, 1
      %s96 = scalar_select %p93, %s94, %s95
      %p99 = pneg %p93
      %p100 = scmp.eq.s32.totalorder %s16, 1
      %p101 = por %p99, %p100
      %p102 = scmp.ne.s32.totalorder %s94, %s97
      %p103 = scmp.eq.s32.totalorder %s16, 0
      %p104 = por %p102, %p103
      %p105 = scmp.ne.s32.totalorder %s94, %s97
      %p106 = scmp.eq.s32.totalorder %s21, 1
      %p107 = por %p105, %p106
      %p108 = scmp.ne.s32.totalorder %s97, %s98
      %p109 = scmp.eq.s32.totalorder %s21, 0
      %p110 = por %p108, %p109
      %p111 = scmp.ne.s32.totalorder %s97, %s98
      %p112 = scmp.eq.s32.totalorder %s22, 1
      %p113 = por %p111, %p112
      %p115 = scmp.ne.s32.totalorder %s98, %s114
      %p116 = scmp.eq.s32.totalorder %s22, 0
      %p117 = por %p115, %p116
      %p118 = scmp.le.s32.totalorder 1, %s16
      %p119 = scmp.lt.s32.totalorder %s16, 3
      %p120 = pnand %p118, %p119
      %p121 = pneg %p120
      // Predicated region
      $region9: #{tpu_custom_call.1} parent=5 // pred_check
        _
      $region10: #{tpu_custom_call.1} parent=5 // pred_check_branch
        %123 = sbr.rel (%p120) target = $region12
      $region11: #{tpu_custom_call.1} parent=5 // pred_region
        %s124 = ssub.s32 %s16, 1
        // Predicated region
        $region13: #{tpu_custom_call.1} parent=11 // pred_check
          %p125 = pneg %p63
        $region14: #{tpu_custom_call.1} parent=11 // pred_check_branch
          %127 = sbr.rel (%p125) target = $region16
        $region15: #{tpu_custom_call.1} parent=11 // pred_region
          %s129 = ssub.s32 3072, 3072
          %130 = vsyncadd [#allocation6], %s129
          %s131 = sshll.u32 [#allocation5], 4
          %s132 = int_to_ptr.vmem [resolvable:$true] %s131
          %137 = dma.hbm_to_vmem [thread:$0]  %s1, 3072, %s132, [#allocation6], 64, 64, 4
        $region16: #{tpu_custom_call.1} parent=11 // pred_fallthru
          _
        // Predicated region
        $region17: #{tpu_custom_call.1} parent=11 // pred_check
          %p138 = pneg %p84
        $region18: #{tpu_custom_call.1} parent=11 // pred_check_branch
          %140 = sbr.rel (%p138) target = $region20
        $region19: #{tpu_custom_call.1} parent=11 // pred_region
          %s142 = ssub.s32 384, 384
          %143 = vsyncadd [#allocation6], %s142
          %s144 = sshll.u32 [#allocation7], 4
          %s145 = int_to_ptr.vmem [resolvable:$true] %s144
          %150 = dma.hbm_to_vmem [thread:$0]  %s2, 384, %s145, [#allocation6], 128, 128, 8
        $region20: #{tpu_custom_call.1} parent=11 // pred_fallthru
          _
      $region12: #{tpu_custom_call.1} parent=5 // pred_fallthru
        _
      %p151 = scmp.lt.s32.totalorder %s16, 2
      // Predicated region
      $region21: #{tpu_custom_call.1} parent=5 // pred_check
        %p152 = pneg %p151
      $region22: #{tpu_custom_call.1} parent=5 // pred_check_branch
        %154 = sbr.rel (%p152) target = $region24
      $region23: #{tpu_custom_call.1} parent=5 // pred_region
        // Predicated region
        $region25: #{tpu_custom_call.1} parent=23 // pred_check
          %p155 = pneg %p36
        $region26: #{tpu_custom_call.1} parent=23 // pred_check_branch
          %157 = sbr.rel (%p155) target = $region28
        $region27: #{tpu_custom_call.1} parent=23 // pred_region
          %s158 = sand.u32 %s26, 1
          %s159 = scalar_lea.sflag [#allocation3], %s158
          %s160 = sand.u32 %s26, 1
          %s161 = smul.addr %s160, 32
          %s162 = scalar_lea.vmem [#allocation2], %s161
          %s163 = smul.u32 4, %s16
          %s165 = ssub.s32 512, 512
          %166 = vsyncadd %s159, %s165
          %s167 = smul.addr %s163, 128
          %s168 = scalar_lea.hbm %s0, %s167
          %s169 = sshll.u32 %s162, 4
          %s170 = int_to_ptr.vmem [resolvable:$true] %s169
          %175 = dma.hbm_to_vmem [thread:$0]  %s168, 512, %s170, %s159, 128, 128, 8
        $region28: #{tpu_custom_call.1} parent=23 // pred_fallthru
          _
      $region24: #{tpu_custom_call.1} parent=5 // pred_fallthru
        _
      %p176 = scmp.le.s32.totalorder 1, %s16
      %p177 = scmp.lt.s32.totalorder %s16, 3
      %p178 = pnand %p176, %p177
      %p179 = pneg %p178
      // Predicated region
      $region29: #{tpu_custom_call.1} parent=5 // pred_check
        _
      $region30: #{tpu_custom_call.1} parent=5 // pred_check_branch
        %181 = sbr.rel (%p178) target = $region32
      $region31: #{tpu_custom_call.1} parent=5 // pred_region
        %s182 = ssub.s32 %s16, 1
        %s183 = sand.u32 %s29, 1
        %s184 = scalar_lea.sflag [#allocation3], %s183
        %s185 = sand.u32 %s29, 1
        %s186 = smul.addr %s185, 32
        %s187 = scalar_lea.vmem [#allocation2], %s186
        // Predicated region
        $region33: #{tpu_custom_call.1} parent=31 // pred_check
          %p188 = pneg %p42
        $region34: #{tpu_custom_call.1} parent=31 // pred_check_branch
          %190 = sbr.rel (%p188) target = $region36
        $region35: #{tpu_custom_call.1} parent=31 // pred_region
          %191 = dma.done %s184, 512
        $region36: #{tpu_custom_call.1} parent=31 // pred_fallthru
          _
        // Predicated region
        $region37: #{tpu_custom_call.1} parent=31 // pred_check
          %p192 = pneg %p63
        $region38: #{tpu_custom_call.1} parent=31 // pred_check_branch
          %194 = sbr.rel (%p192) target = $region40
        $region39: #{tpu_custom_call.1} parent=31 // pred_region
          %195 = dma.done [#allocation6], 3072
        $region40: #{tpu_custom_call.1} parent=31 // pred_fallthru
          _
        // Predicated region
        $region41: #{tpu_custom_call.1} parent=31 // pred_check
          %p196 = pneg %p84
        $region42: #{tpu_custom_call.1} parent=31 // pred_check_branch
          %198 = sbr.rel (%p196) target = $region44
        $region43: #{tpu_custom_call.1} parent=31 // pred_region
          %199 = dma.done [#allocation6], 384
        $region44: #{tpu_custom_call.1} parent=31 // pred_fallthru
          _
        %s200 = sand.u32 %s29, 1
        %s201 = scalar_lea.sflag [#allocation3], %s200
        %s202 = sand.u32 %s29, 1
        %s203 = smul.addr %s202, 32
        %s204 = scalar_lea.vmem [#allocation2], %s203
        %p205 = pneg %p42
        %p206 = pneg %p39
        %p207 = pneg %p63
        %p208 = pneg %p60
        %p209 = pneg %p84
        %p210 = pneg %p81
        %p211 = pneg %p110
        %p212 = pneg %p107
        %s213 = sand.u32 %s97, 1
        %s214 = scalar_lea.sflag [#allocation4], %s213
        %s215 = sand.u32 %s97, 1
        %s216 = smul.addr %s215, 32
        %s217 = scalar_lea.vmem [#allocation8], %s216
        %s218 = smul.u32 4, %s21
        %s219 = smul.u32 4, %s21
        %v221 = vlaneseq
        %v222 = vand.u32 %v221, 127
        %vm223 = vcmp.lt.s32.totalorder %v222, 32
        %v224 = vsel %vm223, 1, 0
        %v225 = vcvt.s32.f32 %v224
        %vm226 = vcmp.ge.s32.totalorder %v222, 64
        %v227 = vsel %vm226, 1, 0
        %v228 = vcvt.s32.f32 %v227
        %v229 = vld [vmem:[#allocation5] sm:$0xf]
        %v230 = vld [vmem:[#allocation5 + $0x4] sm:$0xf]
        %v231 = vld [vmem:[#allocation5 + $0x8] sm:$0xf]
        %v232 = vld [vmem:[#allocation5 + $0xc] sm:$0xf]
        %v233 = vld [vmem:[#allocation5 + $0x10] sm:$0xf]
        %v234 = vld [vmem:[#allocation5 + $0x14] sm:$0xf]
        %v235 = vld [vmem:[#allocation5 + $0x18] sm:$0xf]
        %v236 = vld [vmem:[#allocation5 + $0x1c] sm:$0xf]
        %v237 = vld [vmem:[#allocation5 + $0x20] sm:$0xf]
        %v238 = vld [vmem:[#allocation5 + $0x24] sm:$0xf]
        %v239 = vld [vmem:[#allocation5 + $0x28] sm:$0xf]
        %v240 = vld [vmem:[#allocation5 + $0x2c] sm:$0xf]
        %v241 = vld [vmem:[#allocation5 + $0x30] sm:$0xf]
        %v242 = vld [vmem:[#allocation5 + $0x34] sm:$0xf]
        %v243 = vld [vmem:[#allocation5 + $0x38] sm:$0xf]
        %v244 = vld [vmem:[#allocation5 + $0x3c] sm:$0xf]
        %v245 = vld [vmem:[%s187] sm:$0xff]
        %v246 = vld [vmem:[%s187 + $0x8] sm:$0xff]
        %v247 = vld [vmem:[%s187 + $0x10] sm:$0xff]
        %v248 = vld [vmem:[%s187 + $0x18] sm:$0xff]
        %v249 = vpack.c.bf16 %v246, %v245
        %v250 = vpack.c.bf16 %v248, %v247
        %v251 = vld [vmem:[#allocation7] sm:$0x1]
        %v252 = vlaneseq
        %v253 = vshrl.u32 %v252, 7
        %v254 = vsub.s32 0, %v253
        %v255 = vrot.slane %v251, %v254
        %v272 = vunpack.c.l.b16 %v229
        %v273 = vunpack.c.l.b16 %v230
        %v274 = vunpack.c.l.b16 %v231
        %v275 = vunpack.c.l.b16 %v232
        %v276 = vunpack.c.l.b16 %v233
        %v277 = vunpack.c.l.b16 %v234
        %v278 = vunpack.c.l.b16 %v235
        %v279 = vunpack.c.l.b16 %v236
        %v280 = vunpack.c.l.b16 %v237
        %v281 = vunpack.c.l.b16 %v238
        %v282 = vunpack.c.l.b16 %v239
        %v283 = vunpack.c.l.b16 %v240
        %v284 = vunpack.c.l.b16 %v241
        %v285 = vunpack.c.l.b16 %v242
        %v286 = vunpack.c.l.b16 %v243
        %v287 = vunpack.c.l.b16 %v244
        %v288 = vpack.c.b16 %v273, %v272
        %v289 = vpack.c.b16 %v275, %v274
        %v290 = vpack.c.b16 %v277, %v276
        %v291 = vpack.c.b16 %v279, %v278
        %v292 = vpack.c.b16 %v281, %v280
        %v293 = vpack.c.b16 %v283, %v282
        %v294 = vpack.c.b16 %v285, %v284
        %v295 = vpack.c.b16 %v287, %v286
        %304 = vmatprep.subr.bf16.mxu0 0
        %305 = vmatpush1.bf16.msra.mxu0 %v288
        %306 = vmatprep.subr.bf16.mxu0 0
        %307 = vmatpush1.bf16.msra.mxu0 %v289
        %308 = vmatprep.subr.bf16.mxu0 0
        %309 = vmatpush1.bf16.msra.mxu0 %v290
        %310 = vmatprep.subr.bf16.mxu0 0
        %311 = vmatpush1.bf16.msra.mxu0 %v291
        %312 = vmatprep.subr.bf16.mxu0 0
        %313 = vmatpush1.bf16.msra.mxu0 %v292
        %314 = vmatprep.subr.bf16.mxu0 0
        %315 = vmatpush1.bf16.msra.mxu0 %v293
        %316 = vmatprep.subr.bf16.mxu0 0
        %317 = vmatpush1.bf16.msra.mxu0 %v294
        %318 = vmatprep.subr.bf16.mxu0 0
        %319 = vmatpush1.bf16.msra.mxu0 %v295
        %320 = vmatprep.subr.bf16.mxu0 0
        %321 = vmatpush1.bf16.msra.mxu0 0
        %322 = vmatprep.subr.bf16.mxu0 0
        %323 = vmatpush1.bf16.msra.mxu0 0
        %324 = vmatprep.subr.bf16.mxu0 0
        %325 = vmatpush1.bf16.msra.mxu0 0
        %326 = vmatprep.subr.bf16.mxu0 0
        %327 = vmatpush1.bf16.msra.mxu0 0
        %328 = vmatprep.subr.bf16.mxu0 0
        %329 = vmatpush1.bf16.msra.mxu0 0
        %330 = vmatprep.subr.bf16.mxu0 0
        %331 = vmatpush1.bf16.msra.mxu0 0
        %332 = vmatprep.subr.bf16.mxu0 0
        %333 = vmatpush1.bf16.msra.mxu0 0
        %334 = vmatprep.subr.bf16.mxu0 0
        %335 = vmatpush1.bf16.msra.mxu0 0
        %336 = vmatprep.mubr.bf16.mxu0 0
        %337 = vmatmul.mubr.bf16.gmra.mrb[0].mxu0 %v249
        %v338 = vpop.f32.mrb[0].mxu0
        %v339 = vadd.f32 %v255, %v338
        %v340 = vpop.f32.mrb[0].mxu0
        %v341 = vpop.f32.mrb[0].mxu0
        %v342 = vadd.f32 %v255, %v341
        %v343 = vpop.f32.mrb[0].mxu0
        %344 = vmatprep.mubr.bf16.mxu0 0
        %345 = vmatmul.mubr.bf16.gmra.mrb[0].mxu0 %v250
        %v346 = vpop.f32.mrb[0].mxu0
        %v347 = vadd.f32 %v255, %v346
        %v348 = vpop.f32.mrb[0].mxu0
        %v349 = vpop.f32.mrb[0].mxu0
        %v350 = vadd.f32 %v255, %v349
        %v351 = vpop.f32.mrb[0].mxu0
        %352 = vdwg.mxu0
        %v353 = vmul.f32 %v339, %v225
        %v354 = vmul.f32 %v342, %v225
        %v355 = vmul.f32 %v347, %v225
        %v356 = vmul.f32 %v350, %v225
        %v357 = vld [vmem:[#allocation5 + $0x40] sm:$0xf]
        %v358 = vld [vmem:[#allocation5 + $0x44] sm:$0xf]
        %v359 = vld [vmem:[#allocation5 + $0x48] sm:$0xf]
        %v360 = vld [vmem:[#allocation5 + $0x4c] sm:$0xf]
        %v361 = vld [vmem:[#allocation5 + $0x50] sm:$0xf]
        %v362 = vld [vmem:[#allocation5 + $0x54] sm:$0xf]
        %v363 = vld [vmem:[#allocation5 + $0x58] sm:$0xf]
        %v364 = vld [vmem:[#allocation5 + $0x5c] sm:$0xf]
        %v365 = vld [vmem:[#allocation5 + $0x60] sm:$0xf]
        %v366 = vld [vmem:[#allocation5 + $0x64] sm:$0xf]
        %v367 = vld [vmem:[#allocation5 + $0x68] sm:$0xf]
        %v368 = vld [vmem:[#allocation5 + $0x6c] sm:$0xf]
        %v369 = vld [vmem:[#allocation5 + $0x70] sm:$0xf]
        %v370 = vld [vmem:[#allocation5 + $0x74] sm:$0xf]
        %v371 = vld [vmem:[#allocation5 + $0x78] sm:$0xf]
        %v372 = vld [vmem:[#allocation5 + $0x7c] sm:$0xf]
        %v373 = vpack.c.bf16 %v354, %v353
        %v374 = vpack.c.bf16 %v356, %v355
        %v375 = vld [vmem:[#allocation7 + $0x1] sm:$0x1]
        %v376 = vlaneseq
        %v377 = vshrl.u32 %v376, 7
        %v378 = vsub.s32 0, %v377
        %v379 = vrot.slane %v375, %v378
        %v396 = vunpack.c.l.b16 %v357
        %v397 = vunpack.c.l.b16 %v358
        %v398 = vunpack.c.l.b16 %v359
        %v399 = vunpack.c.l.b16 %v360
        %v400 = vunpack.c.l.b16 %v361
        %v401 = vunpack.c.l.b16 %v362
        %v402 = vunpack.c.l.b16 %v363
        %v403 = vunpack.c.l.b16 %v364
        %v404 = vunpack.c.l.b16 %v365
        %v405 = vunpack.c.l.b16 %v366
        %v406 = vunpack.c.l.b16 %v367
        %v407 = vunpack.c.l.b16 %v368
        %v408 = vunpack.c.l.b16 %v369
        %v409 = vunpack.c.l.b16 %v370
        %v410 = vunpack.c.l.b16 %v371
        %v411 = vunpack.c.l.b16 %v372
        %v412 = vpack.c.b16 %v397, %v396
        %v413 = vpack.c.b16 %v399, %v398
        %v414 = vpack.c.b16 %v401, %v400
        %v415 = vpack.c.b16 %v403, %v402
        %v416 = vpack.c.b16 %v405, %v404
        %v417 = vpack.c.b16 %v407, %v406
        %v418 = vpack.c.b16 %v409, %v408
        %v419 = vpack.c.b16 %v411, %v410
        %428 = vmatprep.subr.bf16.mxu0 0
        %429 = vmatpush1.bf16.msra.mxu0 %v412
        %430 = vmatprep.subr.bf16.mxu0 0
        %431 = vmatpush1.bf16.msra.mxu0 %v413
        %432 = vmatprep.subr.bf16.mxu0 0
        %433 = vmatpush1.bf16.msra.mxu0 %v414
        %434 = vmatprep.subr.bf16.mxu0 0
        %435 = vmatpush1.bf16.msra.mxu0 %v415
        %436 = vmatprep.subr.bf16.mxu0 0
        %437 = vmatpush1.bf16.msra.mxu0 %v416
        %438 = vmatprep.subr.bf16.mxu0 0
        %439 = vmatpush1.bf16.msra.mxu0 %v417
        %440 = vmatprep.subr.bf16.mxu0 0
        %441 = vmatpush1.bf16.msra.mxu0 %v418
        %442 = vmatprep.subr.bf16.mxu0 0
        %443 = vmatpush1.bf16.msra.mxu0 %v419
        %444 = vmatprep.subr.bf16.mxu0 0
        %445 = vmatpush1.bf16.msra.mxu0 0
        %446 = vmatprep.subr.bf16.mxu0 0
        %447 = vmatpush1.bf16.msra.mxu0 0
        %448 = vmatprep.subr.bf16.mxu0 0
        %449 = vmatpush1.bf16.msra.mxu0 0
        %450 = vmatprep.subr.bf16.mxu0 0
        %451 = vmatpush1.bf16.msra.mxu0 0
        %452 = vmatprep.subr.bf16.mxu0 0
        %453 = vmatpush1.bf16.msra.mxu0 0
        %454 = vmatprep.subr.bf16.mxu0 0
        %455 = vmatpush1.bf16.msra.mxu0 0
        %456 = vmatprep.subr.bf16.mxu0 0
        %457 = vmatpush1.bf16.msra.mxu0 0
        %458 = vmatprep.subr.bf16.mxu0 0
        %459 = vmatpush1.bf16.msra.mxu0 0
        %460 = vmatprep.mubr.bf16.mxu0 0
        %461 = vmatmul.mubr.bf16.gmra.mrb[0].mxu0 %v373
        %v462 = vpop.f32.mrb[0].mxu0
        %v463 = vadd.f32 %v379, %v462
        %v464 = vpop.f32.mrb[0].mxu0
        %v465 = vpop.f32.mrb[0].mxu0
        %v466 = vadd.f32 %v379, %v465
        %v467 = vpop.f32.mrb[0].mxu0
        %468 = vmatprep.mubr.bf16.mxu0 0
        %469 = vmatmul.mubr.bf16.gmra.mrb[0].mxu0 %v374
        %v470 = vpop.f32.mrb[0].mxu0
        %v471 = vadd.f32 %v379, %v470
        %v472 = vpop.f32.mrb[0].mxu0
        %v473 = vpop.f32.mrb[0].mxu0
        %v474 = vadd.f32 %v379, %v473
        %v475 = vpop.f32.mrb[0].mxu0
        %476 = vdwg.mxu0
        %v477 = vmul.f32 %v463, %v225
        %v478 = vmul.f32 %v466, %v225
        %v479 = vmul.f32 %v471, %v225
        %v480 = vmul.f32 %v474, %v225
        %v481 = vadd.f32 %v353, %v477
        %v482 = vadd.f32 %v354, %v478
        %v483 = vadd.f32 %v355, %v479
        %v484 = vadd.f32 %v356, %v480
        %v485 = vld [vmem:[#allocation7 + $0x4] sm:$0x1]
        %v486 = vld [vmem:[#allocation7 + $0x5] sm:$0x1]
        %487 = vadd.xlane.f32.xlu0 %v481
        %v488 = vpop.xlane.xlu0 %487
        %489 = vadd.xlane.f32.xlu0 %v482
        %v490 = vpop.xlane.xlu0 %489
        %491 = vadd.xlane.f32.xlu0 %v483
        %v492 = vpop.xlane.xlu0 %491
        %493 = vadd.xlane.f32.xlu0 %v484
        %v494 = vpop.xlane.xlu0 %493
        %v495 = vmul.f32 %v488, 0.03125
        %v496 = vmul.f32 %v490, 0.03125
        %v497 = vmul.f32 %v492, 0.03125
        %v498 = vmul.f32 %v494, 0.03125
        %v499 = vsub.f32 %v481, %v495
        %v500 = vsub.f32 %v482, %v496
        %v501 = vsub.f32 %v483, %v497
        %v502 = vsub.f32 %v484, %v498
        %v503 = vmul.f32 %v499, %v225
        %v504 = vmul.f32 %v500, %v225
        %v505 = vmul.f32 %v501, %v225
        %v506 = vmul.f32 %v502, %v225
        %v507 = vmul.f32 %v503, %v503
        %v508 = vmul.f32 %v504, %v504
        %v509 = vmul.f32 %v505, %v505
        %v510 = vmul.f32 %v506, %v506
        %511 = vadd.xlane.f32.xlu0 %v507
        %v512 = vpop.xlane.xlu0 %511
        %513 = vadd.xlane.f32.xlu0 %v508
        %v514 = vpop.xlane.xlu0 %513
        %515 = vadd.xlane.f32.xlu0 %v509
        %v516 = vpop.xlane.xlu0 %515
        %517 = vadd.xlane.f32.xlu0 %v510
        %v518 = vpop.xlane.xlu0 %517
        %v519 = vmul.f32 %v512, 0.03125
        %v520 = vmul.f32 %v514, 0.03125
        %v521 = vmul.f32 %v516, 0.03125
        %v522 = vmul.f32 %v518, 0.03125
        %v523 = vadd.f32 %v519, 1e-05
        %v524 = vadd.f32 %v520, 1e-05
        %v525 = vadd.f32 %v521, 1e-05
        %v526 = vadd.f32 %v522, 1e-05
        %v527 = vrsqrt.pop %v523
        %v528 = vrsqrt.pop %v524
        %v529 = vrsqrt.pop %v525
        %v530 = vrsqrt.pop %v526
        %v531 = vmul.f32 %v503, %v527
        %v532 = vmul.f32 %v504, %v528
        %v533 = vmul.f32 %v505, %v529
        %v534 = vmul.f32 %v506, %v530
        %v535 = vlaneseq
        %v536 = vshrl.u32 %v535, 7
        %v537 = vsub.s32 0, %v536
        %v538 = vrot.slane %v485, %v537
        %v539 = vmul.f32 %v531, %v538
        %v540 = vmul.f32 %v532, %v538
        %v541 = vmul.f32 %v533, %v538
        %v542 = vmul.f32 %v534, %v538
        %v543 = vlaneseq
        %v544 = vshrl.u32 %v543, 7
        %v545 = vsub.s32 0, %v544
        %v546 = vrot.slane %v486, %v545
        %v547 = vadd.f32 %v539, %v546
        %v548 = vadd.f32 %v540, %v546
        %v549 = vadd.f32 %v541, %v546
        %v550 = vadd.f32 %v542, %v546
        %v551 = vpack.c.bf16 %v548, %v547
        %v552 = vpack.c.bf16 %v550, %v549
        %v553 = vld [vmem:[#allocation7 + $0x2] sm:$0x1]
        %v554 = vlaneseq
        %v555 = vshrl.u32 %v554, 7
        %v556 = vsub.s32 0, %v555
        %v557 = vrot.slane %v553, %v556
        %558 = vmatprep.subr.bf16.mxu0 0
        %559 = vmatpush1.bf16.msra.mxu0 %v412
        %560 = vmatprep.subr.bf16.mxu0 0
        %561 = vmatpush1.bf16.msra.mxu0 %v413
        %562 = vmatprep.subr.bf16.mxu0 0
        %563 = vmatpush1.bf16.msra.mxu0 %v414
        %564 = vmatprep.subr.bf16.mxu0 0
        %565 = vmatpush1.bf16.msra.mxu0 %v415
        %566 = vmatprep.subr.bf16.mxu0 0
        %567 = vmatpush1.bf16.msra.mxu0 %v416
        %568 = vmatprep.subr.bf16.mxu0 0
        %569 = vmatpush1.bf16.msra.mxu0 %v417
        %570 = vmatprep.subr.bf16.mxu0 0
        %571 = vmatpush1.bf16.msra.mxu0 %v418
        %572 = vmatprep.subr.bf16.mxu0 0
        %573 = vmatpush1.bf16.msra.mxu0 %v419
        %574 = vmatprep.subr.bf16.mxu0 0
        %575 = vmatpush1.bf16.msra.mxu0 0
        %576 = vmatprep.subr.bf16.mxu0 0
        %577 = vmatpush1.bf16.msra.mxu0 0
        %578 = vmatprep.subr.bf16.mxu0 0
        %579 = vmatpush1.bf16.msra.mxu0 0
        %580 = vmatprep.subr.bf16.mxu0 0
        %581 = vmatpush1.bf16.msra.mxu0 0
        %582 = vmatprep.subr.bf16.mxu0 0
        %583 = vmatpush1.bf16.msra.mxu0 0
        %584 = vmatprep.subr.bf16.mxu0 0
        %585 = vmatpush1.bf16.msra.mxu0 0
        %586 = vmatprep.subr.bf16.mxu0 0
        %587 = vmatpush1.bf16.msra.mxu0 0
        %588 = vmatprep.subr.bf16.mxu0 0
        %589 = vmatpush1.bf16.msra.mxu0 0
        %590 = vmatprep.mubr.bf16.mxu0 0
        %591 = vmatmul.mubr.bf16.gmra.mrb[0].mxu0 %v551
        %v592 = vpop.f32.mrb[0].mxu0
        %v593 = vadd.f32 %v557, %v592
        %v594 = vpop.f32.mrb[0].mxu0
        %v595 = vpop.f32.mrb[0].mxu0
        %v596 = vadd.f32 %v557, %v595
        %v597 = vpop.f32.mrb[0].mxu0
        %598 = vmatprep.mubr.bf16.mxu0 0
        %599 = vmatmul.mubr.bf16.gmra.mrb[0].mxu0 %v552
        %v600 = vpop.f32.mrb[0].mxu0
        %v601 = vadd.f32 %v557, %v600
        %v602 = vpop.f32.mrb[0].mxu0
        %v603 = vpop.f32.mrb[0].mxu0
        %v604 = vadd.f32 %v557, %v603
        %v605 = vpop.f32.mrb[0].mxu0
        %606 = vdwg.mxu0
        %v607 = vmax.f32 %v593, 0.0
        %v608 = vmax.f32 %v596, 0.0
        %v609 = vmax.f32 %v601, 0.0
        %v610 = vmax.f32 %v604, 0.0
        %v611 = vmul.f32 %v607, %v228
        %v612 = vmul.f32 %v608, %v228
        %v613 = vmul.f32 %v609, %v228
        %v614 = vmul.f32 %v610, %v228
        %v615 = vpack.c.bf16 %v612, %v611
        %v616 = vpack.c.bf16 %v614, %v613
        %v617 = vld [vmem:[#allocation7 + $0x3] sm:$0x1]
        %v618 = vlaneseq
        %v619 = vshrl.u32 %v618, 7
        %v620 = vsub.s32 0, %v619
        %v621 = vrot.slane %v617, %v620
        %622 = vmatprep.subr.bf16.mxu0 0
        %623 = vmatpush1.bf16.msra.mxu0 %v412
        %624 = vmatprep.subr.bf16.mxu0 0
        %625 = vmatpush1.bf16.msra.mxu0 %v413
        %626 = vmatprep.subr.bf16.mxu0 0
        %627 = vmatpush1.bf16.msra.mxu0 %v414
        %628 = vmatprep.subr.bf16.mxu0 0
        %629 = vmatpush1.bf16.msra.mxu0 %v415
        %630 = vmatprep.subr.bf16.mxu0 0
        %631 = vmatpush1.bf16.msra.mxu0 %v416
        %632 = vmatprep.subr.bf16.mxu0 0
        %633 = vmatpush1.bf16.msra.mxu0 %v417
        %634 = vmatprep.subr.bf16.mxu0 0
        %635 = vmatpush1.bf16.msra.mxu0 %v418
        %636 = vmatprep.subr.bf16.mxu0 0
        %637 = vmatpush1.bf16.msra.mxu0 %v419
        %638 = vmatprep.subr.bf16.mxu0 0
        %639 = vmatpush1.bf16.msra.mxu0 0
        %640 = vmatprep.subr.bf16.mxu0 0
        %641 = vmatpush1.bf16.msra.mxu0 0
        %642 = vmatprep.subr.bf16.mxu0 0
        %643 = vmatpush1.bf16.msra.mxu0 0
        %644 = vmatprep.subr.bf16.mxu0 0
        %645 = vmatpush1.bf16.msra.mxu0 0
        %646 = vmatprep.subr.bf16.mxu0 0
        %647 = vmatpush1.bf16.msra.mxu0 0
        %648 = vmatprep.subr.bf16.mxu0 0
        %649 = vmatpush1.bf16.msra.mxu0 0
        %650 = vmatprep.subr.bf16.mxu0 0
        %651 = vmatpush1.bf16.msra.mxu0 0
        %652 = vmatprep.subr.bf16.mxu0 0
        %653 = vmatpush1.bf16.msra.mxu0 0
        %654 = vmatprep.mubr.bf16.mxu0 0
        %655 = vmatmul.mubr.bf16.gmra.mrb[0].mxu0 %v615
        %v656 = vpop.f32.mrb[0].mxu0
        %v657 = vadd.f32 %v621, %v656
        %v658 = vpop.f32.mrb[0].mxu0
        %v659 = vpop.f32.mrb[0].mxu0
        %v660 = vadd.f32 %v621, %v659
        %v661 = vpop.f32.mrb[0].mxu0
        %662 = vmatprep.mubr.bf16.mxu0 0
        %663 = vmatmul.mubr.bf16.gmra.mrb[0].mxu0 %v616
        %v664 = vpop.f32.mrb[0].mxu0
        %v665 = vadd.f32 %v621, %v664
        %v666 = vpop.f32.mrb[0].mxu0
        %v667 = vpop.f32.mrb[0].mxu0
        %v668 = vadd.f32 %v621, %v667
        %v669 = vpop.f32.mrb[0].mxu0
        %670 = vdwg.mxu0
        %v671 = vadd.f32 %v547, %v657
        %v672 = vadd.f32 %v548, %v660
        %v673 = vadd.f32 %v549, %v665
        %v674 = vadd.f32 %v550, %v668
        %v675 = vld [vmem:[#allocation7 + $0x6] sm:$0x1]
        %v676 = vld [vmem:[#allocation7 + $0x7] sm:$0x1]
        %677 = vadd.xlane.f32.xlu0 %v671
        %v678 = vpop.xlane.xlu0 %677
        %679 = vadd.xlane.f32.xlu0 %v672
        %v680 = vpop.xlane.xlu0 %679
        %681 = vadd.xlane.f32.xlu0 %v673
        %v682 = vpop.xlane.xlu0 %681
        %683 = vadd.xlane.f32.xlu0 %v674
        %v684 = vpop.xlane.xlu0 %683
        %v685 = vmul.f32 %v678, 0.03125
        %v686 = vmul.f32 %v680, 0.03125
        %v687 = vmul.f32 %v682, 0.03125
        %v688 = vmul.f32 %v684, 0.03125
        %v689 = vsub.f32 %v671, %v685
        %v690 = vsub.f32 %v672, %v686
        %v691 = vsub.f32 %v673, %v687
        %v692 = vsub.f32 %v674, %v688
        %v693 = vmul.f32 %v689, %v225
        %v694 = vmul.f32 %v690, %v225
        %v695 = vmul.f32 %v691, %v225
        %v696 = vmul.f32 %v692, %v225
        %v697 = vmul.f32 %v693, %v693
        %v698 = vmul.f32 %v694, %v694
        %v699 = vmul.f32 %v695, %v695
        %v700 = vmul.f32 %v696, %v696
        %701 = vadd.xlane.f32.xlu0 %v697
        %v702 = vpop.xlane.xlu0 %701
        %703 = vadd.xlane.f32.xlu0 %v698
        %v704 = vpop.xlane.xlu0 %703
        %705 = vadd.xlane.f32.xlu0 %v699
        %v706 = vpop.xlane.xlu0 %705
        %707 = vadd.xlane.f32.xlu0 %v700
        %v708 = vpop.xlane.xlu0 %707
        %v709 = vmul.f32 %v702, 0.03125
        %v710 = vmul.f32 %v704, 0.03125
        %v711 = vmul.f32 %v706, 0.03125
        %v712 = vmul.f32 %v708, 0.03125
        %v713 = vadd.f32 %v709, 1e-05
        %v714 = vadd.f32 %v710, 1e-05
        %v715 = vadd.f32 %v711, 1e-05
        %v716 = vadd.f32 %v712, 1e-05
        %v717 = vrsqrt.pop %v713
        %v718 = vrsqrt.pop %v714
        %v719 = vrsqrt.pop %v715
        %v720 = vrsqrt.pop %v716
        %v721 = vmul.f32 %v693, %v717
        %v722 = vmul.f32 %v694, %v718
        %v723 = vmul.f32 %v695, %v719
        %v724 = vmul.f32 %v696, %v720
        %v725 = vlaneseq
        %v726 = vshrl.u32 %v725, 7
        %v727 = vsub.s32 0, %v726
        %v728 = vrot.slane %v675, %v727
        %v729 = vmul.f32 %v721, %v728
        %v730 = vmul.f32 %v722, %v728
        %v731 = vmul.f32 %v723, %v728
        %v732 = vmul.f32 %v724, %v728
        %v733 = vlaneseq
        %v734 = vshrl.u32 %v733, 7
        %v735 = vsub.s32 0, %v734
        %v736 = vrot.slane %v676, %v735
        %v737 = vadd.f32 %v729, %v736
        %v738 = vadd.f32 %v730, %v736
        %v739 = vadd.f32 %v731, %v736
        %v740 = vadd.f32 %v732, %v736
        %v741 = vld [vmem:[#allocation5 + $0x80] sm:$0xf]
        %v742 = vld [vmem:[#allocation5 + $0x84] sm:$0xf]
        %v743 = vld [vmem:[#allocation5 + $0x88] sm:$0xf]
        %v744 = vld [vmem:[#allocation5 + $0x8c] sm:$0xf]
        %v745 = vld [vmem:[#allocation5 + $0x90] sm:$0xf]
        %v746 = vld [vmem:[#allocation5 + $0x94] sm:$0xf]
        %v747 = vld [vmem:[#allocation5 + $0x98] sm:$0xf]
        %v748 = vld [vmem:[#allocation5 + $0x9c] sm:$0xf]
        %v749 = vld [vmem:[#allocation5 + $0xa0] sm:$0xf]
        %v750 = vld [vmem:[#allocation5 + $0xa4] sm:$0xf]
        %v751 = vld [vmem:[#allocation5 + $0xa8] sm:$0xf]
        %v752 = vld [vmem:[#allocation5 + $0xac] sm:$0xf]
        %v753 = vld [vmem:[#allocation5 + $0xb0] sm:$0xf]
        %v754 = vld [vmem:[#allocation5 + $0xb4] sm:$0xf]
        %v755 = vld [vmem:[#allocation5 + $0xb8] sm:$0xf]
        %v756 = vld [vmem:[#allocation5 + $0xbc] sm:$0xf]
        %v757 = vpack.c.bf16 %v738, %v737
        %v758 = vpack.c.bf16 %v740, %v739
        %v759 = vld [vmem:[#allocation7 + $0x8] sm:$0x1]
        %v760 = vlaneseq
        %v761 = vshrl.u32 %v760, 7
        %v762 = vsub.s32 0, %v761
        %v763 = vrot.slane %v759, %v762
        %v780 = vunpack.c.l.b16 %v741
        %v781 = vunpack.c.l.b16 %v742
        %v782 = vunpack.c.l.b16 %v743
        %v783 = vunpack.c.l.b16 %v744
        %v784 = vunpack.c.l.b16 %v745
        %v785 = vunpack.c.l.b16 %v746
        %v786 = vunpack.c.l.b16 %v747
        %v787 = vunpack.c.l.b16 %v748
        %v788 = vunpack.c.l.b16 %v749
        %v789 = vunpack.c.l.b16 %v750
        %v790 = vunpack.c.l.b16 %v751
        %v791 = vunpack.c.l.b16 %v752
        %v792 = vunpack.c.l.b16 %v753
        %v793 = vunpack.c.l.b16 %v754
        %v794 = vunpack.c.l.b16 %v755
        %v795 = vunpack.c.l.b16 %v756
        %v796 = vpack.c.b16 %v781, %v780
        %v797 = vpack.c.b16 %v783, %v782
        %v798 = vpack.c.b16 %v785, %v784
        %v799 = vpack.c.b16 %v787, %v786
        %v800 = vpack.c.b16 %v789, %v788
        %v801 = vpack.c.b16 %v791, %v790
        %v802 = vpack.c.b16 %v793, %v792
        %v803 = vpack.c.b16 %v795, %v794
        %812 = vmatprep.subr.bf16.mxu0 0
        %813 = vmatpush1.bf16.msra.mxu0 %v796
        %814 = vmatprep.subr.bf16.mxu0 0
        %815 = vmatpush1.bf16.msra.mxu0 %v797
        %816 = vmatprep.subr.bf16.mxu0 0
        %817 = vmatpush1.bf16.msra.mxu0 %v798
        %818 = vmatprep.subr.bf16.mxu0 0
        %819 = vmatpush1.bf16.msra.mxu0 %v799
        %820 = vmatprep.subr.bf16.mxu0 0
        %821 = vmatpush1.bf16.msra.mxu0 %v800
        %822 = vmatprep.subr.bf16.mxu0 0
        %823 = vmatpush1.bf16.msra.mxu0 %v801
        %824 = vmatprep.subr.bf16.mxu0 0
        %825 = vmatpush1.bf16.msra.mxu0 %v802
        %826 = vmatprep.subr.bf16.mxu0 0
        %827 = vmatpush1.bf16.msra.mxu0 %v803
        %828 = vmatprep.subr.bf16.mxu0 0
        %829 = vmatpush1.bf16.msra.mxu0 0
        %830 = vmatprep.subr.bf16.mxu0 0
        %831 = vmatpush1.bf16.msra.mxu0 0
        %832 = vmatprep.subr.bf16.mxu0 0
        %833 = vmatpush1.bf16.msra.mxu0 0
        %834 = vmatprep.subr.bf16.mxu0 0
        %835 = vmatpush1.bf16.msra.mxu0 0
        %836 = vmatprep.subr.bf16.mxu0 0
        %837 = vmatpush1.bf16.msra.mxu0 0
        %838 = vmatprep.subr.bf16.mxu0 0
        %839 = vmatpush1.bf16.msra.mxu0 0
        %840 = vmatprep.subr.bf16.mxu0 0
        %841 = vmatpush1.bf16.msra.mxu0 0
        %842 = vmatprep.subr.bf16.mxu0 0
        %843 = vmatpush1.bf16.msra.mxu0 0
        %844 = vmatprep.mubr.bf16.mxu0 0
        %845 = vmatmul.mubr.bf16.gmra.mrb[0].mxu0 %v757
        %v846 = vpop.f32.mrb[0].mxu0
        %v847 = vadd.f32 %v763, %v846
        %v848 = vpop.f32.mrb[0].mxu0
        %v849 = vpop.f32.mrb[0].mxu0
        %v850 = vadd.f32 %v763, %v849
        %v851 = vpop.f32.mrb[0].mxu0
        %852 = vmatprep.mubr.bf16.mxu0 0
        %853 = vmatmul.mubr.bf16.gmra.mrb[0].mxu0 %v758
        %v854 = vpop.f32.mrb[0].mxu0
        %v855 = vadd.f32 %v763, %v854
        %v856 = vpop.f32.mrb[0].mxu0
        %v857 = vpop.f32.mrb[0].mxu0
        %v858 = vadd.f32 %v763, %v857
        %v859 = vpop.f32.mrb[0].mxu0
        %860 = vdwg.mxu0
        %v861 = vmul.f32 %v847, %v225
        %v862 = vmul.f32 %v850, %v225
        %v863 = vmul.f32 %v855, %v225
        %v864 = vmul.f32 %v858, %v225
        %v865 = vadd.f32 %v737, %v861
        %v866 = vadd.f32 %v738, %v862
        %v867 = vadd.f32 %v739, %v863
        %v868 = vadd.f32 %v740, %v864
        %v869 = vld [vmem:[#allocation7 + $0xb] sm:$0x1]
        %v870 = vld [vmem:[#allocation7 + $0xc] sm:$0x1]
        %871 = vadd.xlane.f32.xlu0 %v865
        %v872 = vpop.xlane.xlu0 %871
        %873 = vadd.xlane.f32.xlu0 %v866
        %v874 = vpop.xlane.xlu0 %873
        %875 = vadd.xlane.f32.xlu0 %v867
        %v876 = vpop.xlane.xlu0 %875
        %877 = vadd.xlane.f32.xlu0 %v868
        %v878 = vpop.xlane.xlu0 %877
        %v879 = vmul.f32 %v872, 0.03125
        %v880 = vmul.f32 %v874, 0.03125
        %v881 = vmul.f32 %v876, 0.03125
        %v882 = vmul.f32 %v878, 0.03125
        %v883 = vsub.f32 %v865, %v879
        %v884 = vsub.f32 %v866, %v880
        %v885 = vsub.f32 %v867, %v881
        %v886 = vsub.f32 %v868, %v882
        %v887 = vmul.f32 %v883, %v225
        %v888 = vmul.f32 %v884, %v225
        %v889 = vmul.f32 %v885, %v225
        %v890 = vmul.f32 %v886, %v225
        %v891 = vmul.f32 %v887, %v887
        %v892 = vmul.f32 %v888, %v888
        %v893 = vmul.f32 %v889, %v889
        %v894 = vmul.f32 %v890, %v890
        %895 = vadd.xlane.f32.xlu0 %v891
        %v896 = vpop.xlane.xlu0 %895
        %897 = vadd.xlane.f32.xlu0 %v892
        %v898 = vpop.xlane.xlu0 %897
        %899 = vadd.xlane.f32.xlu0 %v893
        %v900 = vpop.xlane.xlu0 %899
        %901 = vadd.xlane.f32.xlu0 %v894
        %v902 = vpop.xlane.xlu0 %901
        %v903 = vmul.f32 %v896, 0.03125
        %v904 = vmul.f32 %v898, 0.03125
        %v905 = vmul.f32 %v900, 0.03125
        %v906 = vmul.f32 %v902, 0.03125
        %v907 = vadd.f32 %v903, 1e-05
        %v908 = vadd.f32 %v904, 1e-05
        %v909 = vadd.f32 %v905, 1e-05
        %v910 = vadd.f32 %v906, 1e-05
        %v911 = vrsqrt.pop %v907
        %v912 = vrsqrt.pop %v908
        %v913 = vrsqrt.pop %v909
        %v914 = vrsqrt.pop %v910
        %v915 = vmul.f32 %v887, %v911
        %v916 = vmul.f32 %v888, %v912
        %v917 = vmul.f32 %v889, %v913
        %v918 = vmul.f32 %v890, %v914
        %v919 = vlaneseq
        %v920 = vshrl.u32 %v919, 7
        %v921 = vsub.s32 0, %v920
        %v922 = vrot.slane %v869, %v921
        %v923 = vmul.f32 %v915, %v922
        %v924 = vmul.f32 %v916, %v922
        %v925 = vmul.f32 %v917, %v922
        %v926 = vmul.f32 %v918, %v922
        %v927 = vlaneseq
        %v928 = vshrl.u32 %v927, 7
        %v929 = vsub.s32 0, %v928
        %v930 = vrot.slane %v870, %v929
        %v931 = vadd.f32 %v923, %v930
        %v932 = vadd.f32 %v924, %v930
        %v933 = vadd.f32 %v925, %v930
        %v934 = vadd.f32 %v926, %v930
        %v935 = vpack.c.bf16 %v932, %v931
        %v936 = vpack.c.bf16 %v934, %v933
        %v937 = vld [vmem:[#allocation7 + $0x9] sm:$0x1]
        %v938 = vlaneseq
        %v939 = vshrl.u32 %v938, 7
        %v940 = vsub.s32 0, %v939
        %v941 = vrot.slane %v937, %v940
        %942 = vmatprep.subr.bf16.mxu0 0
        %943 = vmatpush1.bf16.msra.mxu0 %v796
        %944 = vmatprep.subr.bf16.mxu0 0
        %945 = vmatpush1.bf16.msra.mxu0 %v797
        %946 = vmatprep.subr.bf16.mxu0 0
        %947 = vmatpush1.bf16.msra.mxu0 %v798
        %948 = vmatprep.subr.bf16.mxu0 0
        %949 = vmatpush1.bf16.msra.mxu0 %v799
        %950 = vmatprep.subr.bf16.mxu0 0
        %951 = vmatpush1.bf16.msra.mxu0 %v800
        %952 = vmatprep.subr.bf16.mxu0 0
        %953 = vmatpush1.bf16.msra.mxu0 %v801
        %954 = vmatprep.subr.bf16.mxu0 0
        %955 = vmatpush1.bf16.msra.mxu0 %v802
        %956 = vmatprep.subr.bf16.mxu0 0
        %957 = vmatpush1.bf16.msra.mxu0 %v803
        %958 = vmatprep.subr.bf16.mxu0 0
        %959 = vmatpush1.bf16.msra.mxu0 0
        %960 = vmatprep.subr.bf16.mxu0 0
        %961 = vmatpush1.bf16.msra.mxu0 0
        %962 = vmatprep.subr.bf16.mxu0 0
        %963 = vmatpush1.bf16.msra.mxu0 0
        %964 = vmatprep.subr.bf16.mxu0 0
        %965 = vmatpush1.bf16.msra.mxu0 0
        %966 = vmatprep.subr.bf16.mxu0 0
        %967 = vmatpush1.bf16.msra.mxu0 0
        %968 = vmatprep.subr.bf16.mxu0 0
        %969 = vmatpush1.bf16.msra.mxu0 0
        %970 = vmatprep.subr.bf16.mxu0 0
        %971 = vmatpush1.bf16.msra.mxu0 0
        %972 = vmatprep.subr.bf16.mxu0 0
        %973 = vmatpush1.bf16.msra.mxu0 0
        %974 = vmatprep.mubr.bf16.mxu0 0
        %975 = vmatmul.mubr.bf16.gmra.mrb[0].mxu0 %v935
        %v976 = vpop.f32.mrb[0].mxu0
        %v977 = vadd.f32 %v941, %v976
        %v978 = vpop.f32.mrb[0].mxu0
        %v979 = vpop.f32.mrb[0].mxu0
        %v980 = vadd.f32 %v941, %v979
        %v981 = vpop.f32.mrb[0].mxu0
        %982 = vmatprep.mubr.bf16.mxu0 0
        %983 = vmatmul.mubr.bf16.gmra.mrb[0].mxu0 %v936
        %v984 = vpop.f32.mrb[0].mxu0
        %v985 = vadd.f32 %v941, %v984
        %v986 = vpop.f32.mrb[0].mxu0
        %v987 = vpop.f32.mrb[0].mxu0
        %v988 = vadd.f32 %v941, %v987
        %v989 = vpop.f32.mrb[0].mxu0
        %990 = vdwg.mxu0
        %v991 = vmax.f32 %v977, 0.0
        %v992 = vmax.f32 %v980, 0.0
        %v993 = vmax.f32 %v985, 0.0
        %v994 = vmax.f32 %v988, 0.0
        %v995 = vmul.f32 %v991, %v228
        %v996 = vmul.f32 %v992, %v228
        %v997 = vmul.f32 %v993, %v228
        %v998 = vmul.f32 %v994, %v228
        %v999 = vpack.c.bf16 %v996, %v995
        %v1000 = vpack.c.bf16 %v998, %v997
        %v1001 = vld [vmem:[#allocation7 + $0xa] sm:$0x1]
        %v1002 = vlaneseq
        %v1003 = vshrl.u32 %v1002, 7
        %v1004 = vsub.s32 0, %v1003
        %v1005 = vrot.slane %v1001, %v1004
        %1006 = vmatprep.subr.bf16.mxu0 0
        %1007 = vmatpush1.bf16.msra.mxu0 %v796
        %1008 = vmatprep.subr.bf16.mxu0 0
        %1009 = vmatpush1.bf16.msra.mxu0 %v797
        %1010 = vmatprep.subr.bf16.mxu0 0
        %1011 = vmatpush1.bf16.msra.mxu0 %v798
        %1012 = vmatprep.subr.bf16.mxu0 0
        %1013 = vmatpush1.bf16.msra.mxu0 %v799
        %1014 = vmatprep.subr.bf16.mxu0 0
        %1015 = vmatpush1.bf16.msra.mxu0 %v800
        %1016 = vmatprep.subr.bf16.mxu0 0
        %1017 = vmatpush1.bf16.msra.mxu0 %v801
        %1018 = vmatprep.subr.bf16.mxu0 0
        %1019 = vmatpush1.bf16.msra.mxu0 %v802
        %1020 = vmatprep.subr.bf16.mxu0 0
        %1021 = vmatpush1.bf16.msra.mxu0 %v803
        %1022 = vmatprep.subr.bf16.mxu0 0
        %1023 = vmatpush1.bf16.msra.mxu0 0
        %1024 = vmatprep.subr.bf16.mxu0 0
        %1025 = vmatpush1.bf16.msra.mxu0 0
        %1026 = vmatprep.subr.bf16.mxu0 0
        %1027 = vmatpush1.bf16.msra.mxu0 0
        %1028 = vmatprep.subr.bf16.mxu0 0
        %1029 = vmatpush1.bf16.msra.mxu0 0
        %1030 = vmatprep.subr.bf16.mxu0 0
        %1031 = vmatpush1.bf16.msra.mxu0 0
        %1032 = vmatprep.subr.bf16.mxu0 0
        %1033 = vmatpush1.bf16.msra.mxu0 0
        %1034 = vmatprep.subr.bf16.mxu0 0
        %1035 = vmatpush1.bf16.msra.mxu0 0
        %1036 = vmatprep.subr.bf16.mxu0 0
        %1037 = vmatpush1.bf16.msra.mxu0 0
        %1038 = vmatprep.mubr.bf16.mxu0 0
        %1039 = vmatmul.mubr.bf16.gmra.mrb[0].mxu0 %v999
        %v1040 = vpop.f32.mrb[0].mxu0
        %v1041 = vadd.f32 %v1005, %v1040
        %v1042 = vpop.f32.mrb[0].mxu0
        %v1043 = vpop.f32.mrb[0].mxu0
        %v1044 = vadd.f32 %v1005, %v1043
        %v1045 = vpop.f32.mrb[0].mxu0
        %1046 = vmatprep.mubr.bf16.mxu0 0
        %1047 = vmatmul.mubr.bf16.gmra.mrb[0].mxu0 %v1000
        %v1048 = vpop.f32.mrb[0].mxu0
        %v1049 = vadd.f32 %v1005, %v1048
        %v1050 = vpop.f32.mrb[0].mxu0
        %v1051 = vpop.f32.mrb[0].mxu0
        %v1052 = vadd.f32 %v1005, %v1051
        %v1053 = vpop.f32.mrb[0].mxu0
        %1054 = vdwg.mxu0
        %v1055 = vadd.f32 %v931, %v1041
        %v1056 = vadd.f32 %v932, %v1044
        %v1057 = vadd.f32 %v933, %v1049
        %v1058 = vadd.f32 %v934, %v1052
        %v1059 = vld [vmem:[#allocation7 + $0xd] sm:$0x1]
        %v1060 = vld [vmem:[#allocation7 + $0xe] sm:$0x1]
        %1061 = vadd.xlane.f32.xlu0 %v1055
        %v1062 = vpop.xlane.xlu0 %1061
        %1063 = vadd.xlane.f32.xlu0 %v1056
        %v1064 = vpop.xlane.xlu0 %1063
        %1065 = vadd.xlane.f32.xlu0 %v1057
        %v1066 = vpop.xlane.xlu0 %1065
        %1067 = vadd.xlane.f32.xlu0 %v1058
        %v1068 = vpop.xlane.xlu0 %1067
        %v1069 = vmul.f32 %v1062, 0.03125
        %v1070 = vmul.f32 %v1064, 0.03125
        %v1071 = vmul.f32 %v1066, 0.03125
        %v1072 = vmul.f32 %v1068, 0.03125
        %v1073 = vsub.f32 %v1055, %v1069
        %v1074 = vsub.f32 %v1056, %v1070
        %v1075 = vsub.f32 %v1057, %v1071
        %v1076 = vsub.f32 %v1058, %v1072
        %v1077 = vmul.f32 %v1073, %v225
        %v1078 = vmul.f32 %v1074, %v225
        %v1079 = vmul.f32 %v1075, %v225
        %v1080 = vmul.f32 %v1076, %v225
        %v1081 = vmul.f32 %v1077, %v1077
        %v1082 = vmul.f32 %v1078, %v1078
        %v1083 = vmul.f32 %v1079, %v1079
        %v1084 = vmul.f32 %v1080, %v1080
        %1085 = vadd.xlane.f32.xlu0 %v1081
        %v1086 = vpop.xlane.xlu0 %1085
        %1087 = vadd.xlane.f32.xlu0 %v1082
        %v1088 = vpop.xlane.xlu0 %1087
        %1089 = vadd.xlane.f32.xlu0 %v1083
        %v1090 = vpop.xlane.xlu0 %1089
        %1091 = vadd.xlane.f32.xlu0 %v1084
        %v1092 = vpop.xlane.xlu0 %1091
        %v1093 = vmul.f32 %v1086, 0.03125
        %v1094 = vmul.f32 %v1088, 0.03125
        %v1095 = vmul.f32 %v1090, 0.03125
        %v1096 = vmul.f32 %v1092, 0.03125
        %v1097 = vadd.f32 %v1093, 1e-05
        %v1098 = vadd.f32 %v1094, 1e-05
        %v1099 = vadd.f32 %v1095, 1e-05
        %v1100 = vadd.f32 %v1096, 1e-05
        %v1101 = vrsqrt.pop %v1097
        %v1102 = vrsqrt.pop %v1098
        %v1103 = vrsqrt.pop %v1099
        %v1104 = vrsqrt.pop %v1100
        %v1105 = vmul.f32 %v1077, %v1101
        %v1106 = vmul.f32 %v1078, %v1102
        %v1107 = vmul.f32 %v1079, %v1103
        %v1108 = vmul.f32 %v1080, %v1104
        %v1109 = vlaneseq
        %v1110 = vshrl.u32 %v1109, 7
        %v1111 = vsub.s32 0, %v1110
        %v1112 = vrot.slane %v1059, %v1111
        %v1113 = vmul.f32 %v1105, %v1112
        %v1114 = vmul.f32 %v1106, %v1112
        %v1115 = vmul.f32 %v1107, %v1112
        %v1116 = vmul.f32 %v1108, %v1112
        %v1117 = vlaneseq
        %v1118 = vshrl.u32 %v1117, 7
        %v1119 = vsub.s32 0, %v1118
        %v1120 = vrot.slane %v1060, %v1119
        %v1121 = vadd.f32 %v1113, %v1120
        %v1122 = vadd.f32 %v1114, %v1120
        %v1123 = vadd.f32 %v1115, %v1120
        %v1124 = vadd.f32 %v1116, %v1120
        %v1125 = vpack.c.bf16 %v1122, %v1121
        %v1126 = vpack.c.bf16 %v1124, %v1123
        %v1127 = vld [vmem:[#allocation7 + $0xf] sm:$0x1]
        %v1128 = vlaneseq
        %v1129 = vshrl.u32 %v1128, 7
        %v1130 = vsub.s32 0, %v1129
        %v1131 = vrot.slane %v1127, %v1130
        %1132 = vmatprep.subr.bf16.mxu0 0
        %1133 = vmatpush1.bf16.msra.mxu0 %v288
        %1134 = vmatprep.subr.bf16.mxu0 0
        %1135 = vmatpush1.bf16.msra.mxu0 %v289
        %1136 = vmatprep.subr.bf16.mxu0 0
        %1137 = vmatpush1.bf16.msra.mxu0 %v290
        %1138 = vmatprep.subr.bf16.mxu0 0
        %1139 = vmatpush1.bf16.msra.mxu0 %v291
        %1140 = vmatprep.subr.bf16.mxu0 0
        %1141 = vmatpush1.bf16.msra.mxu0 %v292
        %1142 = vmatprep.subr.bf16.mxu0 0
        %1143 = vmatpush1.bf16.msra.mxu0 %v293
        %1144 = vmatprep.subr.bf16.mxu0 0
        %1145 = vmatpush1.bf16.msra.mxu0 %v294
        %1146 = vmatprep.subr.bf16.mxu0 0
        %1147 = vmatpush1.bf16.msra.mxu0 %v295
        %1148 = vmatprep.subr.bf16.mxu0 0
        %1149 = vmatpush1.bf16.msra.mxu0 0
        %1150 = vmatprep.subr.bf16.mxu0 0
        %1151 = vmatpush1.bf16.msra.mxu0 0
        %1152 = vmatprep.subr.bf16.mxu0 0
        %1153 = vmatpush1.bf16.msra.mxu0 0
        %1154 = vmatprep.subr.bf16.mxu0 0
        %1155 = vmatpush1.bf16.msra.mxu0 0
        %1156 = vmatprep.subr.bf16.mxu0 0
        %1157 = vmatpush1.bf16.msra.mxu0 0
        %1158 = vmatprep.subr.bf16.mxu0 0
        %1159 = vmatpush1.bf16.msra.mxu0 0
        %1160 = vmatprep.subr.bf16.mxu0 0
        %1161 = vmatpush1.bf16.msra.mxu0 0
        %1162 = vmatprep.subr.bf16.mxu0 0
        %1163 = vmatpush1.bf16.msra.mxu0 0
        %1164 = vmatprep.mubr.bf16.mxu0 0
        %1165 = vmatmul.mubr.bf16.gmra.mrb[0].mxu0 %v1125
        %v1166 = vpop.f32.mrb[0].mxu0
        %v1167 = vadd.f32 %v1131, %v1166
        %v1168 = vpop.f32.mrb[0].mxu0
        %v1169 = vpop.f32.mrb[0].mxu0
        %v1170 = vadd.f32 %v1131, %v1169
        %v1171 = vpop.f32.mrb[0].mxu0
        %1172 = vmatprep.mubr.bf16.mxu0 0
        %1173 = vmatmul.mubr.bf16.gmra.mrb[0].mxu0 %v1126
        %v1174 = vpop.f32.mrb[0].mxu0
        %v1175 = vadd.f32 %v1131, %v1174
        %v1176 = vpop.f32.mrb[0].mxu0
        %v1177 = vpop.f32.mrb[0].mxu0
        %v1178 = vadd.f32 %v1131, %v1177
        %v1179 = vpop.f32.mrb[0].mxu0
        %1180 = vdwg.mxu0
        %v1181 = vmax.f32 %v1167, 0.0
        %v1182 = vmax.f32 %v1170, 0.0
        %v1183 = vmax.f32 %v1175, 0.0
        %v1184 = vmax.f32 %v1178, 0.0
        %v1185 = vmul.f32 %v1181, %v228
        %v1186 = vmul.f32 %v1182, %v228
        %v1187 = vmul.f32 %v1183, %v228
        %v1188 = vmul.f32 %v1184, %v228
        %v1189 = vpack.c.bf16 %v1186, %v1185
        %v1190 = vpack.c.bf16 %v1188, %v1187
        %v1191 = vld [vmem:[#allocation7 + $0x10] sm:$0x1]
        %v1192 = vlaneseq
        %v1193 = vshrl.u32 %v1192, 7
        %v1194 = vsub.s32 0, %v1193
        %v1195 = vrot.slane %v1191, %v1194
        %1196 = vmatprep.subr.bf16.mxu0 0
        %1197 = vmatpush1.bf16.msra.mxu0 %v288
        %1198 = vmatprep.subr.bf16.mxu0 0
        %1199 = vmatpush1.bf16.msra.mxu0 %v289
        %1200 = vmatprep.subr.bf16.mxu0 0
        %1201 = vmatpush1.bf16.msra.mxu0 %v290
        %1202 = vmatprep.subr.bf16.mxu0 0
        %1203 = vmatpush1.bf16.msra.mxu0 %v291
        %1204 = vmatprep.subr.bf16.mxu0 0
        %1205 = vmatpush1.bf16.msra.mxu0 %v292
        %1206 = vmatprep.subr.bf16.mxu0 0
        %1207 = vmatpush1.bf16.msra.mxu0 %v293
        %1208 = vmatprep.subr.bf16.mxu0 0
        %1209 = vmatpush1.bf16.msra.mxu0 %v294
        %1210 = vmatprep.subr.bf16.mxu0 0
        %1211 = vmatpush1.bf16.msra.mxu0 %v295
        %1212 = vmatprep.subr.bf16.mxu0 0
        %1213 = vmatpush1.bf16.msra.mxu0 0
        %1214 = vmatprep.subr.bf16.mxu0 0
        %1215 = vmatpush1.bf16.msra.mxu0 0
        %1216 = vmatprep.subr.bf16.mxu0 0
        %1217 = vmatpush1.bf16.msra.mxu0 0
        %1218 = vmatprep.subr.bf16.mxu0 0
        %1219 = vmatpush1.bf16.msra.mxu0 0
        %1220 = vmatprep.subr.bf16.mxu0 0
        %1221 = vmatpush1.bf16.msra.mxu0 0
        %1222 = vmatprep.subr.bf16.mxu0 0
        %1223 = vmatpush1.bf16.msra.mxu0 0
        %1224 = vmatprep.subr.bf16.mxu0 0
        %1225 = vmatpush1.bf16.msra.mxu0 0
        %1226 = vmatprep.subr.bf16.mxu0 0
        %1227 = vmatpush1.bf16.msra.mxu0 0
        %1228 = vmatprep.mubr.bf16.mxu0 0
        %1229 = vmatmul.mubr.bf16.gmra.mrb[0].mxu0 %v1189
        %v1230 = vpop.f32.mrb[0].mxu0
        %v1231 = vadd.f32 %v1195, %v1230
        %v1232 = vpop.f32.mrb[0].mxu0
        %v1233 = vpop.f32.mrb[0].mxu0
        %v1234 = vadd.f32 %v1195, %v1233
        %v1235 = vpop.f32.mrb[0].mxu0
        %1236 = vmatprep.mubr.bf16.mxu0 0
        %1237 = vmatmul.mubr.bf16.gmra.mrb[0].mxu0 %v1190
        %v1238 = vpop.f32.mrb[0].mxu0
        %v1239 = vadd.f32 %v1195, %v1238
        %v1240 = vpop.f32.mrb[0].mxu0
        %v1241 = vpop.f32.mrb[0].mxu0
        %v1242 = vadd.f32 %v1195, %v1241
        %v1243 = vpop.f32.mrb[0].mxu0
        %1244 = vdwg.mxu0
        %1245 = vst [vmem:[%s217] sm:$0xff] %v1231
        %1246 = vst [vmem:[%s217 + $0x8] sm:$0xff] %v1234
        %1247 = vst [vmem:[%s217 + $0x10] sm:$0xff] %v1239
        %1248 = vst [vmem:[%s217 + $0x18] sm:$0xff] %v1242
        %s1249 = sand.u32 %s97, 1
        %s1250 = scalar_lea.sflag [#allocation4], %s1249
        %s1251 = sand.u32 %s97, 1
        %s1252 = smul.addr %s1251, 32
        %s1253 = scalar_lea.vmem [#allocation8], %s1252
        // Predicated region
        $region45: #{tpu_custom_call.1} parent=31 // pred_check
          %p1254 = pneg %p107
        $region46: #{tpu_custom_call.1} parent=31 // pred_check_branch
          %1256 = sbr.rel (%p1254) target = $region48
        $region47: #{tpu_custom_call.1} parent=31 // pred_region
          %s1257 = smul.u32 4, %s21
          %s1259 = ssub.s32 512, 512
          %1260 = vsyncadd %s1250, %s1259
          %s1261 = smul.addr %s1257, 128
          %s1262 = scalar_lea.hbm %s3, %s1261
          %s1263 = sshll.u32 %s1253, 4
          %s1264 = int_to_ptr.vmem [resolvable:$true] %s1263
          %1269 = dma.vmem_to_hbm [thread:$0]  %s1264, 512, %s1262, %s1250, 128, 128, 8
        $region48: #{tpu_custom_call.1} parent=31 // pred_fallthru
          _
      $region32: #{tpu_custom_call.1} parent=5 // pred_fallthru
        _
      %p1270 = scmp.le.s32.totalorder 2, %s16
      // Predicated region
      $region49: #{tpu_custom_call.1} parent=5 // pred_check
        %p1271 = pneg %p1270
      $region50: #{tpu_custom_call.1} parent=5 // pred_check_branch
        %1273 = sbr.rel (%p1271) target = $region52
      $region51: #{tpu_custom_call.1} parent=5 // pred_region
        %s1274 = ssub.s32 %s16, 2
        // Predicated region
        $region53: #{tpu_custom_call.1} parent=51 // pred_check
          %p1275 = pneg %p113
        $region54: #{tpu_custom_call.1} parent=51 // pred_check_branch
          %1277 = sbr.rel (%p1275) target = $region56
        $region55: #{tpu_custom_call.1} parent=51 // pred_region
          %s1278 = sand.u32 %s98, 1
          %s1279 = scalar_lea.sflag [#allocation4], %s1278
          %s1280 = sand.u32 %s98, 1
          %s1281 = smul.addr %s1280, 32
          %s1282 = scalar_lea.vmem [#allocation8], %s1281
          %1283 = dma.done %s1279, 512
        $region56: #{tpu_custom_call.1} parent=51 // pred_fallthru
          _
      $region52: #{tpu_custom_call.1} parent=5 // pred_fallthru
        _
    $region6: #{tpu_custom_call.1} parent=1 // loop_footer
      %s20 = sadd.s32 1, %s16
    $region7: #{tpu_custom_call.1} parent=1 // loop_footer_branch
      %15 = sbr.rel target = $region3
    $region8: #{tpu_custom_call.1} parent=1 // loop_exit
      _
    %1284 = vsyncpa [#allocation3], 1
    %s1285 = scalar_lea.sflag [#allocation3], 1
    %1286 = vsyncpa %s1285, 1
    %1287 = vsyncpa [#allocation6], 1
    %1288 = vsyncpa [#allocation4], 1
    %s1289 = scalar_lea.sflag [#allocation4], 1
    %1290 = vsyncpa %s1289, 1

</llo_original>
